<compile_context>
chip_gen: v7x
topology: tpu7x:2x2x1
jax: 0.10.0
libtpu: 0.0.40
codegen_flags: <defaults>
</compile_context>

<pallas_src>
import functools

import jax
import jax.numpy as jnp
from jax.experimental import pallas as pl
from jax.experimental.pallas import tpu as pltpu

VMEM = pl.BlockSpec(memory_space=pltpu.MemorySpace.VMEM)

HP = 128   # padded hidden dim (lane-dense)
CP = 128   # padded class dim (lane-dense output slab)


# ---------------------------------------------------------------------------
# Fused Pallas kernel: 8 SAGE layers + pool + MLP head + masked log_softmax
# ---------------------------------------------------------------------------
def fused_graphsage_kernel(num_classes,
                           a_ref, agg1_ref, xc_ref, wl1_ref, wr1_ref, b1_ref,
                           wcat_ref, bs_ref,
                           p_ref, w1_ref, bl1_ref, w2_ref, bl2_ref, o_ref):
    a = a_ref[...]                                   # [N, N] bf16 (row-normalized)

    # ---- Layer 1 (in_dim = 1): rank-1 broadcast products on the VPU.
    #      agg1 = A_f32 @ x was precomputed in the wrapper (f32 adjacency).
    z1 = agg1_ref[...] * wl1_ref[...] + xc_ref[...] * wr1_ref[...] + b1_ref[...]
    hb = jnp.maximum(z1, 0.0).astype(jnp.bfloat16)   # [N, HP] bf16 (only live copy)

    # ---- Layers 2..L, unrolled; bf16 MXU inputs, f32 accumulation.
    #      Both per-layer matmuls fused into a single K=2*HP contraction.
    for l in range(wcat_ref.shape[0]):
        agg = jnp.dot(a, hb, preferred_element_type=jnp.float32)          # [N, HP] f32
        cat = jnp.concatenate([agg.astype(jnp.bfloat16), hb], axis=-1)    # [N, 2*HP] bf16
        z = jnp.dot(cat, wcat_ref[l], preferred_element_type=jnp.float32) + bs_ref[l]
        hb = jnp.maximum(z, 0.0).astype(jnp.bfloat16)                     # bf16 carry

    # ---- global_add_pool -> relu(lin1) -> (dropout = identity) -> lin2.
    pooled = jnp.dot(p_ref[...], hb, preferred_element_type=jnp.float32)  # [B, HP] f32
    h1 = jnp.maximum(
        jnp.dot(pooled.astype(jnp.bfloat16), w1_ref[...],
                preferred_element_type=jnp.float32) + bl1_ref[...], 0.0)
    # TODO(synk): F.dropout(p=0.5) is identity at inference; training RNG mask not emitted.
    logits = (jnp.dot(h1.astype(jnp.bfloat16), w2_ref[...],
                      preferred_element_type=jnp.float32) + bl2_ref[...])  # [B, CP] f32

    # ---- lane-masked, numerically stable log_softmax over the real classes.
    valid = jax.lax.broadcasted_iota(jnp.int32, logits.shape, 1) < num_classes
    masked = jnp.where(valid, logits, jnp.float32(-1e30))
    m = jnp.max(masked, axis=-1, keepdims=True)
    zc = masked - m
    lse = jnp.log(jnp.sum(jnp.where(valid, jnp.exp(zc), 0.0), axis=-1, keepdims=True))
    o_ref[...] = zc - lse                                                  # [B, CP] lane-dense


# ---------------------------------------------------------------------------
# Host-side graph prep
# ---------------------------------------------------------------------------
def build_adjacency(edge_index, num_nodes):
    """Row-normalized dense adjacency for mean aggregation: A[dst, src] = 1/deg(dst)."""
    src, dst = edge_index[0], edge_index[1]
    a = jnp.zeros((num_nodes, num_nodes), jnp.float32).at[dst, src].add(1.0)
    deg = jnp.sum(a, axis=1, keepdims=True)
    return a / jnp.maximum(deg, 1.0)


def build_pool_matrix(batch, num_graphs):
    """P[b, n] = 1 if node n belongs to graph b (global_add_pool = P @ X)."""
    return (jnp.arange(num_graphs)[:, None] == batch[None, :]).astype(jnp.float32)


def _pad2(a, rows, cols):
    r, c = a.shape
    return jnp.pad(a, ((0, rows - r), (0, cols - c)))


def init_params(key, hidden=64, num_layers=8, num_classes=3):
    """Weights stored [in, out] so y = x @ W + b (== PyTorch x @ W.T, W [out, in])."""
    params = {"convs": []}
    in_dim = 1
    for _ in range(num_layers):
        key, k1, k2 = jax.random.split(key, 3)
        params["convs"].append({
            "wl": 0.1 * jax.random.normal(k1, (in_dim, hidden), jnp.float32),
            "wr": 0.1 * jax.random.normal(k2, (in_dim, hidden), jnp.float32),
            "b": jnp.zeros((1, hidden), jnp.float32),
        })
        in_dim = hidden
    key, k1, k2 = jax.random.split(key, 3)
    params["w1"] = 0.1 * jax.random.normal(k1, (hidden, hidden), jnp.float32)
    params["b1"] = jnp.zeros((1, hidden), jnp.float32)
    params["w2"] = 0.1 * jax.random.normal(k2, (hidden, num_classes), jnp.float32)
    params["b2"] = jnp.zeros((1, num_classes), jnp.float32)
    return params


# ---------------------------------------------------------------------------
# Forward wrapper (single fused pallas_call)
# ---------------------------------------------------------------------------
@functools.partial(jax.jit, static_argnames=("num_graphs",))
def graphsage_forward(params, x, edge_index, batch, num_graphs):
    n = x.shape[0]
    num_layers = len(params["convs"])
    num_classes = params["w2"].shape[1]

    a_f32 = build_adjacency(edge_index, n)                               # [N, N] f32
    agg1 = a_f32 @ x                                                     # [N, 1] f32 (pre-bf16 A)
    a = a_f32.astype(jnp.bfloat16)                                       # [N, N] bf16
    p = build_pool_matrix(batch, num_graphs).astype(jnp.bfloat16)        # [B, N] bf16

    # Layer-1 (in_dim=1) weights as [1, HP] rows for VPU outer products.
    c0 = params["convs"][0]
    wl1 = _pad2(c0["wl"], 1, HP)
    wr1 = _pad2(c0["wr"], 1, HP)
    b1 = _pad2(c0["b"], 1, HP)

    # Remaining layers: [Wl ; Wr] row-concat, zero-padded -> [L-1, 2*HP, HP] bf16.
    rest = params["convs"][1:]
    wcat_stack = jnp.stack([
        jnp.concatenate([_pad2(c["wl"], HP, HP), _pad2(c["wr"], HP, HP)], axis=0)
        for c in rest]).astype(jnp.bfloat16)
    b_stack = jnp.stack([_pad2(c["b"], 1, HP) for c in rest])            # [L-1, 1, HP] f32

    w1 = _pad2(params["w1"], HP, HP).astype(jnp.bfloat16)
    bl1 = _pad2(params["b1"], 1, HP)
    w2 = _pad2(params["w2"], HP, CP).astype(jnp.bfloat16)
    bl2 = _pad2(params["b2"], 1, CP)                                     # plain zero pad

    inputs = (a, agg1, x, wl1, wr1, b1, wcat_stack, b_stack, p, w1, bl1, w2, bl2)

    # VMEM budget: all resident operands + output + activation working set, with headroom.
    in_bytes = sum(int(t.size) * t.dtype.itemsize for t in inputs)
    out_bytes = num_graphs * CP * 4
    act_bytes = n * (2 * HP) * 4 * 3
    vmem_limit = int(min(64 << 20, max(16 << 20, 2 * (in_bytes + out_bytes) + act_bytes)))

    flops = ((num_layers - 1) * (2 * n * n * HP + 2 * n * (2 * HP) * HP)
             + 2 * num_graphs * n * HP
             + 2 * num_graphs * HP * HP
             + 2 * num_graphs * HP * CP)
    cost = pl.CostEstimate(flops=flops,
                           transcendentals=num_graphs * (CP + 1),
                           bytes_accessed=in_bytes + out_bytes)

    out_pad = pl.pallas_call(
        functools.partial(fused_graphsage_kernel, num_classes),
        out_shape=jax.ShapeDtypeStruct((num_graphs, CP), jnp.float32),
        in_specs=[VMEM] * len(inputs),
        out_specs=VMEM,
        compiler_params=pltpu.CompilerParams(vmem_limit_bytes=vmem_limit),
        cost_estimate=cost,
    )(*inputs)
    return out_pad[:, :num_classes]


# Pure-JAX f32 reference (same math, no padding / bf16) for a sanity check.
def reference_forward(params, x, edge_index, batch, num_graphs):
    n = x.shape[0]
    a = build_adjacency(edge_index, n)
    p = build_pool_matrix(batch, num_graphs)
    h = x
    for layer in params["convs"]:
        h = jax.nn.relu(a @ h @ layer["wl"] + h @ layer["wr"] + layer["b"])
    pooled = p @ h
    h1 = jax.nn.relu(pooled @ params["w1"] + params["b1"])
    logits = h1 @ params["w2"] + params["b2"]
    return jax.nn.log_softmax(logits, axis=-1)


# ---------------------------------------------------------------------------
# Demo
# ---------------------------------------------------------------------------
if __name__ == "__main__":
    key = jax.random.PRNGKey(0)

    # NOTE(perf): at this demo scale the kernel is launch/pipeline-fill bound;
    # batch more graphs/nodes per call (M >= 128 rows) for real throughput.
    num_nodes = 16       # 2 small graphs of 8 nodes each
    num_graphs = 2
    hidden = 64          # module default
    num_layers = 8
    num_edges = 48

    # Node features: [N, 1] as implied by SAGEConv(1, hidden)
    key, kx, ke = jax.random.split(key, 3)
    x = jax.random.normal(kx, (num_nodes, 1), jnp.float32)

    # Random intra-graph edges (nodes 0-7 in graph 0, 8-15 in graph 1)
    e_per_graph = num_edges // 2
    ke1, ke2 = jax.random.split(ke)
    src0 = jax.random.randint(ke1, (e_per_graph,), 0, 8)
    dst0 = jax.random.randint(ke2, (e_per_graph,), 0, 8)
    edge_index = jnp.stack([jnp.concatenate([src0, src0 + 8]),
                            jnp.concatenate([dst0, dst0 + 8])], axis=0).astype(jnp.int32)

    batch = jnp.concatenate([jnp.zeros(8, jnp.int32), jnp.ones(8, jnp.int32)])

    params = init_params(jax.random.PRNGKey(1), hidden=hidden, num_layers=num_layers)

    out = graphsage_forward(params, x, edge_index, batch, num_graphs)
    out = jax.block_until_ready(out)

    assert out.shape == (num_graphs, 3)
    # log_softmax rows exponentiate-sum to 1
    assert jnp.allclose(jnp.sum(jnp.exp(out), axis=-1), 1.0, atol=1e-4)
    # bf16-matmul kernel vs f32 reference (loose tolerance for bf16 inputs)
    ref = reference_forward(params, x, edge_index, batch, num_graphs)
    assert jnp.allclose(out, ref, atol=0.15), float(jnp.max(jnp.abs(out - ref)))
    print("KERNEL_OK")
</pallas_src>

<mosaic_0001>
module attributes {stable_mosaic.version = 11 : i64} {
  func.func private @main(%arg0: i32) attributes {dimension_semantics = [#tpu.dimension_semantics<core_parallel>], iteration_bounds = array<i64: 2>, tpu.core_type = #tpu.core_type<sc_scalar_subcore>, window_params = []} {
    return
  }
}

module attributes {stable_mosaic.version = 11 : i64} {
  func.func private @main(%arg0: i32) attributes {dimension_semantics = [#tpu.dimension_semantics<core_parallel>], iteration_bounds = array<i64: 2>, tpu.core_type = #tpu.core_type<sc_scalar_subcore>, window_params = []} {
    return
  }
}

module attributes {stable_mosaic.version = 11 : i64} {
  func.func @fused_graphsage_kernel(%arg0: memref<16x16xbf16, #tpu.memory_space<vmem>>, %arg1: memref<16x1xf32, #tpu.memory_space<vmem>>, %arg2: memref<16x1xf32, #tpu.memory_space<vmem>>, %arg3: memref<1x128xf32, #tpu.memory_space<vmem>>, %arg4: memref<1x128xf32, #tpu.memory_space<vmem>>, %arg5: memref<1x128xf32, #tpu.memory_space<vmem>>, %arg6: memref<7x256x128xbf16, #tpu.memory_space<vmem>>, %arg7: memref<7x1x128xf32, #tpu.memory_space<vmem>>, %arg8: memref<2x16xbf16, #tpu.memory_space<vmem>>, %arg9: memref<128x128xbf16, #tpu.memory_space<vmem>>, %arg10: memref<1x128xf32, #tpu.memory_space<vmem>>, %arg11: memref<128x128xbf16, #tpu.memory_space<vmem>>, %arg12: memref<1x128xf32, #tpu.memory_space<vmem>>, %arg13: memref<2x128xf32, #tpu.memory_space<vmem>>) attributes {dimension_semantics = [], scalar_prefetch = 0 : i64, scratch_operands = 0 : i64, tpu.core_type = #tpu.core_type<tc>} {
    %c0 = arith.constant 0 : index
    %c0_0 = arith.constant 0 : index
    %0 = vector.load %arg0[%c0, %c0_0] : memref<16x16xbf16, #tpu.memory_space<vmem>>, vector<16x16xbf16>
    %c0_1 = arith.constant 0 : index
    %c0_2 = arith.constant 0 : index
    %1 = vector.load %arg1[%c0_1, %c0_2] : memref<16x1xf32, #tpu.memory_space<vmem>>, vector<16x1xf32>
    %c0_3 = arith.constant 0 : index
    %c0_4 = arith.constant 0 : index
    %2 = vector.load %arg3[%c0_3, %c0_4] : memref<1x128xf32, #tpu.memory_space<vmem>>, vector<1x128xf32>
    %3 = vector.broadcast %1 : vector<16x1xf32> to vector<16x128xf32>
    %4 = vector.broadcast %2 : vector<1x128xf32> to vector<16x128xf32>
    %5 = arith.mulf %3, %4 : vector<16x128xf32>
    %c0_5 = arith.constant 0 : index
    %c0_6 = arith.constant 0 : index
    %6 = vector.load %arg2[%c0_5, %c0_6] : memref<16x1xf32, #tpu.memory_space<vmem>>, vector<16x1xf32>
    %c0_7 = arith.constant 0 : index
    %c0_8 = arith.constant 0 : index
    %7 = vector.load %arg4[%c0_7, %c0_8] : memref<1x128xf32, #tpu.memory_space<vmem>>, vector<1x128xf32>
    %8 = vector.broadcast %6 : vector<16x1xf32> to vector<16x128xf32>
    %9 = vector.broadcast %7 : vector<1x128xf32> to vector<16x128xf32>
    %10 = arith.mulf %8, %9 : vector<16x128xf32>
    %11 = arith.addf %5, %10 : vector<16x128xf32>
    %c0_9 = arith.constant 0 : index
    %c0_10 = arith.constant 0 : index
    %12 = vector.load %arg5[%c0_9, %c0_10] : memref<1x128xf32, #tpu.memory_space<vmem>>, vector<1x128xf32>
    %13 = vector.broadcast %12 : vector<1x128xf32> to vector<16x128xf32>
    %14 = arith.addf %11, %13 : vector<16x128xf32>
    %cst = arith.constant 0.000000e+00 : f32
    %15 = vector.broadcast %cst : f32 to vector<16x128xf32>
    %16 = arith.maximumf %14, %15 : vector<16x128xf32>
    %17 = arith.truncf %16 : vector<16x128xf32> to vector<16x128xbf16>
    %cst_11 = arith.constant dense<0.000000e+00> : vector<16x128xf32>
    %18 = tpu.matmul %0, %17, %cst_11 {dimension_numbers = #tpu.dot_dimension_numbers<[1], [0], [0], [1], [0, 0, 1, 1], [], []>} : vector<16x16xbf16>, vector<16x128xbf16>, vector<16x128xf32> -> vector<16x128xf32>
    %19 = arith.truncf %18 : vector<16x128xf32> to vector<16x128xbf16>
    %20 = tpu.concatenate %19, %17 in 1 : vector<16x128xbf16>, vector<16x128xbf16> -> vector<16x256xbf16>
    %c0_12 = arith.constant 0 : index
    %c0_13 = arith.constant 0 : index
    %c0_14 = arith.constant 0 : index
    %21 = vector.load %arg6[%c0_12, %c0_13, %c0_14] : memref<7x256x128xbf16, #tpu.memory_space<vmem>>, vector<1x256x128xbf16>
    %22 = vector.shape_cast %21 : vector<1x256x128xbf16> to vector<256x128xbf16>
    %cst_15 = arith.constant dense<0.000000e+00> : vector<16x128xf32>
    %23 = tpu.matmul %20, %22, %cst_15 {dimension_numbers = #tpu.dot_dimension_numbers<[1], [0], [0], [1], [0, 0, 1, 1], [], []>} : vector<16x256xbf16>, vector<256x128xbf16>, vector<16x128xf32> -> vector<16x128xf32>
    %c0_16 = arith.constant 0 : index
    %c0_17 = arith.constant 0 : index
    %c0_18 = arith.constant 0 : index
    %24 = vector.load %arg7[%c0_16, %c0_17, %c0_18] : memref<7x1x128xf32, #tpu.memory_space<vmem>>, vector<1x1x128xf32>
    %25 = vector.shape_cast %24 : vector<1x1x128xf32> to vector<1x128xf32>
    %26 = vector.broadcast %25 : vector<1x128xf32> to vector<16x128xf32>
    %27 = arith.addf %23, %26 : vector<16x128xf32>
    %cst_19 = arith.constant 0.000000e+00 : f32
    %28 = vector.broadcast %cst_19 : f32 to vector<16x128xf32>
    %29 = arith.maximumf %27, %28 : vector<16x128xf32>
    %30 = arith.truncf %29 : vector<16x128xf32> to vector<16x128xbf16>
    %cst_20 = arith.constant dense<0.000000e+00> : vector<16x128xf32>
    %31 = tpu.matmul %0, %30, %cst_20 {dimension_numbers = #tpu.dot_dimension_numbers<[1], [0], [0], [1], [0, 0, 1, 1], [], []>} : vector<16x16xbf16>, vector<16x128xbf16>, vector<16x128xf32> -> vector<16x128xf32>
    %32 = arith.truncf %31 : vector<16x128xf32> to vector<16x128xbf16>
    %33 = tpu.concatenate %32, %30 in 1 : vector<16x128xbf16>, vector<16x128xbf16> -> vector<16x256xbf16>
    %c1 = arith.constant 1 : index
    %c0_21 = arith.constant 0 : index
    %c0_22 = arith.constant 0 : index
    %34 = vector.load %arg6[%c1, %c0_21, %c0_22] : memref<7x256x128xbf16, #tpu.memory_space<vmem>>, vector<1x256x128xbf16>
    %35 = vector.shape_cast %34 : vector<1x256x128xbf16> to vector<256x128xbf16>
    %cst_23 = arith.constant dense<0.000000e+00> : vector<16x128xf32>
    %36 = tpu.matmul %33, %35, %cst_23 {dimension_numbers = #tpu.dot_dimension_numbers<[1], [0], [0], [1], [0, 0, 1, 1], [], []>} : vector<16x256xbf16>, vector<256x128xbf16>, vector<16x128xf32> -> vector<16x128xf32>
    %c1_24 = arith.constant 1 : index
    %c0_25 = arith.constant 0 : index
    %c0_26 = arith.constant 0 : index
    %37 = vector.load %arg7[%c1_24, %c0_25, %c0_26] : memref<7x1x128xf32, #tpu.memory_space<vmem>>, vector<1x1x128xf32>
    %38 = vector.shape_cast %37 : vector<1x1x128xf32> to vector<1x128xf32>
    %39 = vector.broadcast %38 : vector<1x128xf32> to vector<16x128xf32>
    %40 = arith.addf %36, %39 : vector<16x128xf32>
    %cst_27 = arith.constant 0.000000e+00 : f32
    %41 = vector.broadcast %cst_27 : f32 to vector<16x128xf32>
    %42 = arith.maximumf %40, %41 : vector<16x128xf32>
    %43 = arith.truncf %42 : vector<16x128xf32> to vector<16x128xbf16>
    %cst_28 = arith.constant dense<0.000000e+00> : vector<16x128xf32>
    %44 = tpu.matmul %0, %43, %cst_28 {dimension_numbers = #tpu.dot_dimension_numbers<[1], [0], [0], [1], [0, 0, 1, 1], [], []>} : vector<16x16xbf16>, vector<16x128xbf16>, vector<16x128xf32> -> vector<16x128xf32>
    %45 = arith.truncf %44 : vector<16x128xf32> to vector<16x128xbf16>
    %46 = tpu.concatenate %45, %43 in 1 : vector<16x128xbf16>, vector<16x128xbf16> -> vector<16x256xbf16>
    %c2 = arith.constant 2 : index
    %c0_29 = arith.constant 0 : index
    %c0_30 = arith.constant 0 : index
    %47 = vector.load %arg6[%c2, %c0_29, %c0_30] : memref<7x256x128xbf16, #tpu.memory_space<vmem>>, vector<1x256x128xbf16>
    %48 = vector.shape_cast %47 : vector<1x256x128xbf16> to vector<256x128xbf16>
    %cst_31 = arith.constant dense<0.000000e+00> : vector<16x128xf32>
    %49 = tpu.matmul %46, %48, %cst_31 {dimension_numbers = #tpu.dot_dimension_numbers<[1], [0], [0], [1], [0, 0, 1, 1], [], []>} : vector<16x256xbf16>, vector<256x128xbf16>, vector<16x128xf32> -> vector<16x128xf32>
    %c2_32 = arith.constant 2 : index
    %c0_33 = arith.constant 0 : index
    %c0_34 = arith.constant 0 : index
    %50 = vector.load %arg7[%c2_32, %c0_33, %c0_34] : memref<7x1x128xf32, #tpu.memory_space<vmem>>, vector<1x1x128xf32>
    %51 = vector.shape_cast %50 : vector<1x1x128xf32> to vector<1x128xf32>
    %52 = vector.broadcast %51 : vector<1x128xf32> to vector<16x128xf32>
    %53 = arith.addf %49, %52 : vector<16x128xf32>
    %cst_35 = arith.constant 0.000000e+00 : f32
    %54 = vector.broadcast %cst_35 : f32 to vector<16x128xf32>
    %55 = arith.maximumf %53, %54 : vector<16x128xf32>
    %56 = arith.truncf %55 : vector<16x128xf32> to vector<16x128xbf16>
    %cst_36 = arith.constant dense<0.000000e+00> : vector<16x128xf32>
    %57 = tpu.matmul %0, %56, %cst_36 {dimension_numbers = #tpu.dot_dimension_numbers<[1], [0], [0], [1], [0, 0, 1, 1], [], []>} : vector<16x16xbf16>, vector<16x128xbf16>, vector<16x128xf32> -> vector<16x128xf32>
    %58 = arith.truncf %57 : vector<16x128xf32> to vector<16x128xbf16>
    %59 = tpu.concatenate %58, %56 in 1 : vector<16x128xbf16>, vector<16x128xbf16> -> vector<16x256xbf16>
    %c3 = arith.constant 3 : index
    %c0_37 = arith.constant 0 : index
    %c0_38 = arith.constant 0 : index
    %60 = vector.load %arg6[%c3, %c0_37, %c0_38] : memref<7x256x128xbf16, #tpu.memory_space<vmem>>, vector<1x256x128xbf16>
    %61 = vector.shape_cast %60 : vector<1x256x128xbf16> to vector<256x128xbf16>
    %cst_39 = arith.constant dense<0.000000e+00> : vector<16x128xf32>
    %62 = tpu.matmul %59, %61, %cst_39 {dimension_numbers = #tpu.dot_dimension_numbers<[1], [0], [0], [1], [0, 0, 1, 1], [], []>} : vector<16x256xbf16>, vector<256x128xbf16>, vector<16x128xf32> -> vector<16x128xf32>
    %c3_40 = arith.constant 3 : index
    %c0_41 = arith.constant 0 : index
    %c0_42 = arith.constant 0 : index
    %63 = vector.load %arg7[%c3_40, %c0_41, %c0_42] : memref<7x1x128xf32, #tpu.memory_space<vmem>>, vector<1x1x128xf32>
    %64 = vector.shape_cast %63 : vector<1x1x128xf32> to vector<1x128xf32>
    %65 = vector.broadcast %64 : vector<1x128xf32> to vector<16x128xf32>
    %66 = arith.addf %62, %65 : vector<16x128xf32>
    %cst_43 = arith.constant 0.000000e+00 : f32
    %67 = vector.broadcast %cst_43 : f32 to vector<16x128xf32>
    %68 = arith.maximumf %66, %67 : vector<16x128xf32>
    %69 = arith.truncf %68 : vector<16x128xf32> to vector<16x128xbf16>
    %cst_44 = arith.constant dense<0.000000e+00> : vector<16x128xf32>
    %70 = tpu.matmul %0, %69, %cst_44 {dimension_numbers = #tpu.dot_dimension_numbers<[1], [0], [0], [1], [0, 0, 1, 1], [], []>} : vector<16x16xbf16>, vector<16x128xbf16>, vector<16x128xf32> -> vector<16x128xf32>
    %71 = arith.truncf %70 : vector<16x128xf32> to vector<16x128xbf16>
    %72 = tpu.concatenate %71, %69 in 1 : vector<16x128xbf16>, vector<16x128xbf16> -> vector<16x256xbf16>
    %c4 = arith.constant 4 : index
    %c0_45 = arith.constant 0 : index
    %c0_46 = arith.constant 0 : index
    %73 = vector.load %arg6[%c4, %c0_45, %c0_46] : memref<7x256x128xbf16, #tpu.memory_space<vmem>>, vector<1x256x128xbf16>
    %74 = vector.shape_cast %73 : vector<1x256x128xbf16> to vector<256x128xbf16>
    %cst_47 = arith.constant dense<0.000000e+00> : vector<16x128xf32>
    %75 = tpu.matmul %72, %74, %cst_47 {dimension_numbers = #tpu.dot_dimension_numbers<[1], [0], [0], [1], [0, 0, 1, 1], [], []>} : vector<16x256xbf16>, vector<256x128xbf16>, vector<16x128xf32> -> vector<16x128xf32>
    %c4_48 = arith.constant 4 : index
    %c0_49 = arith.constant 0 : index
    %c0_50 = arith.constant 0 : index
    %76 = vector.load %arg7[%c4_48, %c0_49, %c0_50] : memref<7x1x128xf32, #tpu.memory_space<vmem>>, vector<1x1x128xf32>
    %77 = vector.shape_cast %76 : vector<1x1x128xf32> to vector<1x128xf32>
    %78 = vector.broadcast %77 : vector<1x128xf32> to vector<16x128xf32>
    %79 = arith.addf %75, %78 : vector<16x128xf32>
    %cst_51 = arith.constant 0.000000e+00 : f32
    %80 = vector.broadcast %cst_51 : f32 to vector<16x128xf32>
    %81 = arith.maximumf %79, %80 : vector<16x128xf32>
    %82 = arith.truncf %81 : vector<16x128xf32> to vector<16x128xbf16>
    %cst_52 = arith.constant dense<0.000000e+00> : vector<16x128xf32>
    %83 = tpu.matmul %0, %82, %cst_52 {dimension_numbers = #tpu.dot_dimension_numbers<[1], [0], [0], [1], [0, 0, 1, 1], [], []>} : vector<16x16xbf16>, vector<16x128xbf16>, vector<16x128xf32> -> vector<16x128xf32>
    %84 = arith.truncf %83 : vector<16x128xf32> to vector<16x128xbf16>
    %85 = tpu.concatenate %84, %82 in 1 : vector<16x128xbf16>, vector<16x128xbf16> -> vector<16x256xbf16>
    %c5 = arith.constant 5 : index
    %c0_53 = arith.constant 0 : index
    %c0_54 = arith.constant 0 : index
    %86 = vector.load %arg6[%c5, %c0_53, %c0_54] : memref<7x256x128xbf16, #tpu.memory_space<vmem>>, vector<1x256x128xbf16>
    %87 = vector.shape_cast %86 : vector<1x256x128xbf16> to vector<256x128xbf16>
    %cst_55 = arith.constant dense<0.000000e+00> : vector<16x128xf32>
    %88 = tpu.matmul %85, %87, %cst_55 {dimension_numbers = #tpu.dot_dimension_numbers<[1], [0], [0], [1], [0, 0, 1, 1], [], []>} : vector<16x256xbf16>, vector<256x128xbf16>, vector<16x128xf32> -> vector<16x128xf32>
    %c5_56 = arith.constant 5 : index
    %c0_57 = arith.constant 0 : index
    %c0_58 = arith.constant 0 : index
    %89 = vector.load %arg7[%c5_56, %c0_57, %c0_58] : memref<7x1x128xf32, #tpu.memory_space<vmem>>, vector<1x1x128xf32>
    %90 = vector.shape_cast %89 : vector<1x1x128xf32> to vector<1x128xf32>
    %91 = vector.broadcast %90 : vector<1x128xf32> to vector<16x128xf32>
    %92 = arith.addf %88, %91 : vector<16x128xf32>
    %cst_59 = arith.constant 0.000000e+00 : f32
    %93 = vector.broadcast %cst_59 : f32 to vector<16x128xf32>
    %94 = arith.maximumf %92, %93 : vector<16x128xf32>
    %95 = arith.truncf %94 : vector<16x128xf32> to vector<16x128xbf16>
    %cst_60 = arith.constant dense<0.000000e+00> : vector<16x128xf32>
    %96 = tpu.matmul %0, %95, %cst_60 {dimension_numbers = #tpu.dot_dimension_numbers<[1], [0], [0], [1], [0, 0, 1, 1], [], []>} : vector<16x16xbf16>, vector<16x128xbf16>, vector<16x128xf32> -> vector<16x128xf32>
    %97 = arith.truncf %96 : vector<16x128xf32> to vector<16x128xbf16>
    %98 = tpu.concatenate %97, %95 in 1 : vector<16x128xbf16>, vector<16x128xbf16> -> vector<16x256xbf16>
    %c6 = arith.constant 6 : index
    %c0_61 = arith.constant 0 : index
    %c0_62 = arith.constant 0 : index
    %99 = vector.load %arg6[%c6, %c0_61, %c0_62] : memref<7x256x128xbf16, #tpu.memory_space<vmem>>, vector<1x256x128xbf16>
    %100 = vector.shape_cast %99 : vector<1x256x128xbf16> to vector<256x128xbf16>
    %cst_63 = arith.constant dense<0.000000e+00> : vector<16x128xf32>
    %101 = tpu.matmul %98, %100, %cst_63 {dimension_numbers = #tpu.dot_dimension_numbers<[1], [0], [0], [1], [0, 0, 1, 1], [], []>} : vector<16x256xbf16>, vector<256x128xbf16>, vector<16x128xf32> -> vector<16x128xf32>
    %c6_64 = arith.constant 6 : index
    %c0_65 = arith.constant 0 : index
    %c0_66 = arith.constant 0 : index
    %102 = vector.load %arg7[%c6_64, %c0_65, %c0_66] : memref<7x1x128xf32, #tpu.memory_space<vmem>>, vector<1x1x128xf32>
    %103 = vector.shape_cast %102 : vector<1x1x128xf32> to vector<1x128xf32>
    %104 = vector.broadcast %103 : vector<1x128xf32> to vector<16x128xf32>
    %105 = arith.addf %101, %104 : vector<16x128xf32>
    %cst_67 = arith.constant 0.000000e+00 : f32
    %106 = vector.broadcast %cst_67 : f32 to vector<16x128xf32>
    %107 = arith.maximumf %105, %106 : vector<16x128xf32>
    %108 = arith.truncf %107 : vector<16x128xf32> to vector<16x128xbf16>
    %c0_68 = arith.constant 0 : index
    %c0_69 = arith.constant 0 : index
    %109 = vector.load %arg8[%c0_68, %c0_69] : memref<2x16xbf16, #tpu.memory_space<vmem>>, vector<2x16xbf16>
    %cst_70 = arith.constant dense<0.000000e+00> : vector<2x128xf32>
    %110 = tpu.matmul %109, %108, %cst_70 {dimension_numbers = #tpu.dot_dimension_numbers<[1], [0], [0], [1], [0, 0, 1, 1], [], []>} : vector<2x16xbf16>, vector<16x128xbf16>, vector<2x128xf32> -> vector<2x128xf32>
    %111 = arith.truncf %110 : vector<2x128xf32> to vector<2x128xbf16>
    %c0_71 = arith.constant 0 : index
    %c0_72 = arith.constant 0 : index
    %112 = vector.load %arg9[%c0_71, %c0_72] : memref<128x128xbf16, #tpu.memory_space<vmem>>, vector<128x128xbf16>
    %cst_73 = arith.constant dense<0.000000e+00> : vector<2x128xf32>
    %113 = tpu.matmul %111, %112, %cst_73 {dimension_numbers = #tpu.dot_dimension_numbers<[1], [0], [0], [1], [0, 0, 1, 1], [], []>} : vector<2x128xbf16>, vector<128x128xbf16>, vector<2x128xf32> -> vector<2x128xf32>
    %c0_74 = arith.constant 0 : index
    %c0_75 = arith.constant 0 : index
    %114 = vector.load %arg10[%c0_74, %c0_75] : memref<1x128xf32, #tpu.memory_space<vmem>>, vector<1x128xf32>
    %115 = vector.broadcast %114 : vector<1x128xf32> to vector<2x128xf32>
    %116 = arith.addf %113, %115 : vector<2x128xf32>
    %cst_76 = arith.constant 0.000000e+00 : f32
    %117 = vector.broadcast %cst_76 : f32 to vector<2x128xf32>
    %118 = arith.maximumf %116, %117 : vector<2x128xf32>
    %119 = arith.truncf %118 : vector<2x128xf32> to vector<2x128xbf16>
    %c0_77 = arith.constant 0 : index
    %c0_78 = arith.constant 0 : index
    %120 = vector.load %arg11[%c0_77, %c0_78] : memref<128x128xbf16, #tpu.memory_space<vmem>>, vector<128x128xbf16>
    %cst_79 = arith.constant dense<0.000000e+00> : vector<2x128xf32>
    %121 = tpu.matmul %119, %120, %cst_79 {dimension_numbers = #tpu.dot_dimension_numbers<[1], [0], [0], [1], [0, 0, 1, 1], [], []>} : vector<2x128xbf16>, vector<128x128xbf16>, vector<2x128xf32> -> vector<2x128xf32>
    %c0_80 = arith.constant 0 : index
    %c0_81 = arith.constant 0 : index
    %122 = vector.load %arg12[%c0_80, %c0_81] : memref<1x128xf32, #tpu.memory_space<vmem>>, vector<1x128xf32>
    %123 = vector.broadcast %122 : vector<1x128xf32> to vector<2x128xf32>
    %124 = arith.addf %121, %123 : vector<2x128xf32>
    %125 = tpu.iota {dimensions = array<i32: 1>} : vector<2x128xi32>
    %c3_i32 = arith.constant 3 : i32
    %126 = vector.broadcast %c3_i32 : i32 to vector<2x128xi32>
    %127 = arith.cmpi slt, %125, %126 : vector<2x128xi32>
    %cst_82 = arith.constant -1.000000e+30 : f32
    %128 = vector.broadcast %cst_82 : f32 to vector<2x128xf32>
    %129 = arith.select %127, %124, %128 : vector<2x128xi1>, vector<2x128xf32>
    %cst_83 = arith.constant dense<0xFF800000> : vector<2xf32>
    %130 = vector.multi_reduction <maximumf>, %129, %cst_83 [1] : vector<2x128xf32> to vector<2xf32>
    %131 = vector.shape_cast %130 : vector<2xf32> to vector<2x1xf32>
    %132 = vector.broadcast %131 : vector<2x1xf32> to vector<2x128xf32>
    %133 = arith.subf %129, %132 : vector<2x128xf32>
    %134 = math.exp %133 : vector<2x128xf32>
    %cst_84 = arith.constant 0.000000e+00 : f32
    %135 = vector.broadcast %cst_84 : f32 to vector<2x128xf32>
    %136 = arith.select %127, %134, %135 : vector<2x128xi1>, vector<2x128xf32>
    %cst_85 = arith.constant dense<0.000000e+00> : vector<2xf32>
    %137 = vector.multi_reduction <add>, %136, %cst_85 [1] : vector<2x128xf32> to vector<2xf32>
    %138 = vector.shape_cast %137 : vector<2xf32> to vector<2x1xf32>
    %139 = math.log %138 : vector<2x1xf32>
    %140 = vector.broadcast %139 : vector<2x1xf32> to vector<2x128xf32>
    %141 = arith.subf %133, %140 : vector<2x128xf32>
    %c0_86 = arith.constant 0 : index
    %c0_87 = arith.constant 0 : index
    %142 = vector.load %arg13[%c0_86, %c0_87] : memref<2x128xf32, #tpu.memory_space<vmem>>, vector<2x128xf32>
    tpu.vector_store %arg13[%c0_86, %c0_87], %141 {strides = array<i32>} : memref<2x128xf32, #tpu.memory_space<vmem>>, vector<2x128xf32>,
    return
  }
}

</mosaic_0001>

<llo_original>
// kernel: graphsage_forward.1
$region0: #{graphsage_forward.1}
  #allocation0 [shape = 'u32[]', space=smem, size = 0x4, offset = 0x4, fixed_abs, tag = 'smem constant byte address 0x4 - core index']
  #allocation1 [shape = 'u32[144,128]{1,0:T(1,128)}', space=vmem, size = 0x12000, scoped, tag = 'internal scratch']
  %s0 = inlined_call_operand.vmem [shape: bf16[16,16], index: 0, kind: input, shape index: {}]
  %s1 = inlined_call_operand.vmem [shape: f32[16,1], index: 1, kind: input, shape index: {}]
  %s2 = inlined_call_operand.vmem [shape: f32[16,1], index: 2, kind: input, shape index: {}]
  %s3 = inlined_call_operand.vmem [shape: f32[1,128], index: 3, kind: input, shape index: {}]
  %s4 = inlined_call_operand.vmem [shape: f32[1,128], index: 4, kind: input, shape index: {}]
  %s5 = inlined_call_operand.vmem [shape: f32[1,128], index: 5, kind: input, shape index: {}]
  %s6 = inlined_call_operand.vmem [shape: bf16[7,256,128], index: 6, kind: input, shape index: {}]
  %s7 = inlined_call_operand.vmem [shape: f32[7,1,128], index: 7, kind: input, shape index: {}]
  %s8 = inlined_call_operand.vmem [shape: bf16[2,16], index: 8, kind: input, shape index: {}]
  %s9 = inlined_call_operand.vmem [shape: bf16[128,128], index: 9, kind: input, shape index: {}]
  %s10 = inlined_call_operand.vmem [shape: f32[1,128], index: 10, kind: input, shape index: {}]
  %s11 = inlined_call_operand.vmem [shape: bf16[128,128], index: 11, kind: input, shape index: {}]
  %s12 = inlined_call_operand.vmem [shape: f32[1,128], index: 12, kind: input, shape index: {}]
  %s13 = inlined_call_operand.hbm [shape: f32[2,128], index: 13, kind: output, shape index: {}]
  %s14 = sld [smem:[#allocation0]]
  $region62: #{graphsage_forward.1} parent=0
    _
  %s16 = ssub.s32 1, %s14
  %s17 = scalar_select 0, %s16, %s14
  $region1: #{graphsage_forward.1} parent=0
    #allocation2 [shape = 'u8[1024]{0}', space=vmem, size = 0x400, scoped, tag = 'output window, operand 0, single buffered']
    #allocation3 [shape = 's32[1]{0}', space=sflag, size = 0x4, scoped, tag = 'scoped memory for graphsage_forward.1']
    %18 = vsyncpa [#allocation3], 0
    // Predicated region
    $region2: #{graphsage_forward.1} parent=1 // pred_check
      _
    $region3: #{graphsage_forward.1} parent=1 // pred_check_branch
      %20 = sbr.rel (0) target = $region5
    $region4: #{graphsage_forward.1} parent=1 // pred_region
      _
    $region5: #{graphsage_forward.1} parent=1 // pred_fallthru
      _
    // Predicated region
    $region6: #{graphsage_forward.1} parent=1 // pred_check
      _
    $region7: #{graphsage_forward.1} parent=1 // pred_check_branch
      %22 = sbr.rel (0) target = $region9
    $region8: #{graphsage_forward.1} parent=1 // pred_region
      _
    $region9: #{graphsage_forward.1} parent=1 // pred_fallthru
      _
    // Predicated region
    $region10: #{graphsage_forward.1} parent=1 // pred_check
      _
    $region11: #{graphsage_forward.1} parent=1 // pred_check_branch
      %24 = sbr.rel (0) target = $region13
    $region12: #{graphsage_forward.1} parent=1 // pred_region
      _
    $region13: #{graphsage_forward.1} parent=1 // pred_fallthru
      _
    // Predicated region
    $region14: #{graphsage_forward.1} parent=1 // pred_check
      _
    $region15: #{graphsage_forward.1} parent=1 // pred_check_branch
      %26 = sbr.rel (0) target = $region17
    $region16: #{graphsage_forward.1} parent=1 // pred_region
      _
    $region17: #{graphsage_forward.1} parent=1 // pred_fallthru
      _
    // Predicated region
    $region18: #{graphsage_forward.1} parent=1 // pred_check
      _
    $region19: #{graphsage_forward.1} parent=1 // pred_check_branch
      %28 = sbr.rel (0) target = $region21
    $region20: #{graphsage_forward.1} parent=1 // pred_region
      _
    $region21: #{graphsage_forward.1} parent=1 // pred_fallthru
      _
    // Predicated region
    $region22: #{graphsage_forward.1} parent=1 // pred_check
      _
    $region23: #{graphsage_forward.1} parent=1 // pred_check_branch
      %30 = sbr.rel (0) target = $region25
    $region24: #{graphsage_forward.1} parent=1 // pred_region
      _
    $region25: #{graphsage_forward.1} parent=1 // pred_fallthru
      _
    // Predicated region
    $region26: #{graphsage_forward.1} parent=1 // pred_check
      _
    $region27: #{graphsage_forward.1} parent=1 // pred_check_branch
      %32 = sbr.rel (0) target = $region29
    $region28: #{graphsage_forward.1} parent=1 // pred_region
      _
    $region29: #{graphsage_forward.1} parent=1 // pred_fallthru
      _
    // Predicated region
    $region30: #{graphsage_forward.1} parent=1 // pred_check
      _
    $region31: #{graphsage_forward.1} parent=1 // pred_check_branch
      %34 = sbr.rel (0) target = $region33
    $region32: #{graphsage_forward.1} parent=1 // pred_region
      _
    $region33: #{graphsage_forward.1} parent=1 // pred_fallthru
      _
    // Predicated region
    $region34: #{graphsage_forward.1} parent=1 // pred_check
      _
    $region35: #{graphsage_forward.1} parent=1 // pred_check_branch
      %36 = sbr.rel (0) target = $region37
    $region36: #{graphsage_forward.1} parent=1 // pred_region
      _
    $region37: #{graphsage_forward.1} parent=1 // pred_fallthru
      _
    // Predicated region
    $region38: #{graphsage_forward.1} parent=1 // pred_check
      _
    $region39: #{graphsage_forward.1} parent=1 // pred_check_branch
      %38 = sbr.rel (0) target = $region41
    $region40: #{graphsage_forward.1} parent=1 // pred_region
      _
    $region41: #{graphsage_forward.1} parent=1 // pred_fallthru
      _
    // Predicated region
    $region42: #{graphsage_forward.1} parent=1 // pred_check
      _
    $region43: #{graphsage_forward.1} parent=1 // pred_check_branch
      %40 = sbr.rel (0) target = $region45
    $region44: #{graphsage_forward.1} parent=1 // pred_region
      _
    $region45: #{graphsage_forward.1} parent=1 // pred_fallthru
      _
    // Predicated region
    $region46: #{graphsage_forward.1} parent=1 // pred_check
      _
    $region47: #{graphsage_forward.1} parent=1 // pred_check_branch
      %42 = sbr.rel (0) target = $region49
    $region48: #{graphsage_forward.1} parent=1 // pred_region
      _
    $region49: #{graphsage_forward.1} parent=1 // pred_fallthru
      _
    // Predicated region
    $region50: #{graphsage_forward.1} parent=1 // pred_check
      _
    $region51: #{graphsage_forward.1} parent=1 // pred_check_branch
      %44 = sbr.rel (0) target = $region53
    $region52: #{graphsage_forward.1} parent=1 // pred_region
      _
    $region53: #{graphsage_forward.1} parent=1 // pred_fallthru
      _
    %v46 = vld [vmem:[%s0] sm:$0xf]
    %v47 = vld [vmem:[%s0 + $0x4] sm:$0xf]
    %v48 = vld [vmem:[%s1] sm:$0xff]
    %v49 = vld [vmem:[%s1 + $0x8] sm:$0xff]
    %v50 = vld [vmem:[%s3] sm:$0x1]
    %52 = vset.pattern.permute.xlu0 0
    %53 = vperm.xlu0 %52, %v48
    %v54 = vpop.permute.xlu0 %53
    %57 = vset.pattern.permute.xlu0 0
    %58 = vperm.xlu0 %57, %v49
    %v59 = vpop.permute.xlu0 %58
    %v62 = vlaneseq
    %v63 = vshrl.u32 %v62, 7
    %v64 = vsub.s32 0, %v63
    %v65 = vrot.slane %v50, %v64
    %v67 = vmul.f32 %v54, %v65
    %v68 = vmul.f32 %v59, %v65
    %v69 = vld [vmem:[%s2] sm:$0xff]
    %v70 = vld [vmem:[%s2 + $0x8] sm:$0xff]
    %v71 = vld [vmem:[%s4] sm:$0x1]
    %73 = vset.pattern.permute.xlu0 0
    %74 = vperm.xlu0 %73, %v69
    %v75 = vpop.permute.xlu0 %74
    %78 = vset.pattern.permute.xlu0 0
    %79 = vperm.xlu0 %78, %v70
    %v80 = vpop.permute.xlu0 %79
    %v83 = vlaneseq
    %v84 = vshrl.u32 %v83, 7
    %v85 = vsub.s32 0, %v84
    %v86 = vrot.slane %v71, %v85
    %v88 = vmul.f32 %v75, %v86
    %v89 = vmul.f32 %v80, %v86
    %v90 = vadd.f32 %v67, %v88
    %v91 = vadd.f32 %v68, %v89
    %v92 = vld [vmem:[%s5] sm:$0x1]
    %v94 = vlaneseq
    %v95 = vshrl.u32 %v94, 7
    %v96 = vsub.s32 0, %v95
    %v97 = vrot.slane %v92, %v96
    %v99 = vadd.f32 %v90, %v97
    %v100 = vadd.f32 %v91, %v97
    %v101 = vmax.f32 %v99, 0.0
    %v102 = vmax.f32 %v100, 0.0
    %v103 = vpack.c.bf16 %v102, %v101
    %v106 = vunpack.c.l.b16 %v46
    %v107 = vunpack.c.l.b16 %v47
    %v108 = vpack.c.b16 %v107, %v106
    %vm109 = vcmask 130048
    %v111 = vsel %vm109, %v108, 0
    %113 = vmatprep.subr.bf16.mxu0 0
    %114 = vmatpush1.bf16.msra.mxu0 %v103
    %115 = vmatprep.subr.bf16.mxu0 0
    %116 = vmatpush1.bf16.msra.mxu0 0
    %117 = vmatprep.subr.bf16.mxu0 0
    %118 = vmatpush1.bf16.msra.mxu0 0
    %119 = vmatprep.subr.bf16.mxu0 0
    %120 = vmatpush1.bf16.msra.mxu0 0
    %121 = vmatprep.subr.bf16.mxu0 0
    %122 = vmatpush1.bf16.msra.mxu0 0
    %123 = vmatprep.subr.bf16.mxu0 0
    %124 = vmatpush1.bf16.msra.mxu0 0
    %125 = vmatprep.subr.bf16.mxu0 0
    %126 = vmatpush1.bf16.msra.mxu0 0
    %127 = vmatprep.subr.bf16.mxu0 0
    %128 = vmatpush1.bf16.msra.mxu0 0
    %129 = vmatprep.subr.bf16.mxu0 0
    %130 = vmatpush1.bf16.msra.mxu0 0
    %131 = vmatprep.subr.bf16.mxu0 0
    %132 = vmatpush1.bf16.msra.mxu0 0
    %133 = vmatprep.subr.bf16.mxu0 0
    %134 = vmatpush1.bf16.msra.mxu0 0
    %135 = vmatprep.subr.bf16.mxu0 0
    %136 = vmatpush1.bf16.msra.mxu0 0
    %137 = vmatprep.subr.bf16.mxu0 0
    %138 = vmatpush1.bf16.msra.mxu0 0
    %139 = vmatprep.subr.bf16.mxu0 0
    %140 = vmatpush1.bf16.msra.mxu0 0
    %141 = vmatprep.subr.bf16.mxu0 0
    %142 = vmatpush1.bf16.msra.mxu0 0
    %143 = vmatprep.subr.bf16.mxu0 0
    %144 = vmatpush1.bf16.msra.mxu0 0
    %145 = vmatprep.mubr.bf16.mxu0 0
    %146 = vmatmul.mubr.bf16.gmra.mrb[0].mxu0 %v111
    %v147 = vpop.f32.mrb[0].mxu0
    %v148 = vadd.f32 0.0, %v147
    %v149 = vpop.f32.mrb[0].mxu0
    %v150 = vpop.f32.mrb[0].mxu0
    %v151 = vadd.f32 0.0, %v150
    %v152 = vpop.f32.mrb[0].mxu0
    %153 = vdwg.mxu0
    %v154 = vpack.c.bf16 %v151, %v148
    %v155 = vld [vmem:[%s6] sm:$0xf]
    %v156 = vld [vmem:[%s6 + $0x4] sm:$0xf]
    %v157 = vld [vmem:[%s6 + $0x8] sm:$0xf]
    %v158 = vld [vmem:[%s6 + $0xc] sm:$0xf]
    %v159 = vld [vmem:[%s6 + $0x10] sm:$0xf]
    %v160 = vld [vmem:[%s6 + $0x14] sm:$0xf]
    %v161 = vld [vmem:[%s6 + $0x18] sm:$0xf]
    %v162 = vld [vmem:[%s6 + $0x1c] sm:$0xf]
    %v163 = vld [vmem:[%s6 + $0x20] sm:$0xf]
    %v164 = vld [vmem:[%s6 + $0x24] sm:$0xf]
    %v165 = vld [vmem:[%s6 + $0x28] sm:$0xf]
    %v166 = vld [vmem:[%s6 + $0x2c] sm:$0xf]
    %v167 = vld [vmem:[%s6 + $0x30] sm:$0xf]
    %v168 = vld [vmem:[%s6 + $0x34] sm:$0xf]
    %v169 = vld [vmem:[%s6 + $0x38] sm:$0xf]
    %v170 = vld [vmem:[%s6 + $0x3c] sm:$0xf]
    %v171 = vld [vmem:[%s6 + $0x40] sm:$0xf]
    %v172 = vld [vmem:[%s6 + $0x44] sm:$0xf]
    %v173 = vld [vmem:[%s6 + $0x48] sm:$0xf]
    %v174 = vld [vmem:[%s6 + $0x4c] sm:$0xf]
    %v175 = vld [vmem:[%s6 + $0x50] sm:$0xf]
    %v176 = vld [vmem:[%s6 + $0x54] sm:$0xf]
    %v177 = vld [vmem:[%s6 + $0x58] sm:$0xf]
    %v178 = vld [vmem:[%s6 + $0x5c] sm:$0xf]
    %v179 = vld [vmem:[%s6 + $0x60] sm:$0xf]
    %v180 = vld [vmem:[%s6 + $0x64] sm:$0xf]
    %v181 = vld [vmem:[%s6 + $0x68] sm:$0xf]
    %v182 = vld [vmem:[%s6 + $0x6c] sm:$0xf]
    %v183 = vld [vmem:[%s6 + $0x70] sm:$0xf]
    %v184 = vld [vmem:[%s6 + $0x74] sm:$0xf]
    %v185 = vld [vmem:[%s6 + $0x78] sm:$0xf]
    %v186 = vld [vmem:[%s6 + $0x7c] sm:$0xf]
    %v187 = vld [vmem:[%s7] sm:$0x1]
    %v189 = vlaneseq
    %v190 = vshrl.u32 %v189, 7
    %v191 = vsub.s32 0, %v190
    %v192 = vrot.slane %v187, %v191
    %v226 = vunpack.c.l.b16 %v155
    %v227 = vunpack.c.l.b16 %v156
    %v228 = vunpack.c.l.b16 %v157
    %v229 = vunpack.c.l.b16 %v158
    %v230 = vunpack.c.l.b16 %v159
    %v231 = vunpack.c.l.b16 %v160
    %v232 = vunpack.c.l.b16 %v161
    %v233 = vunpack.c.l.b16 %v162
    %v234 = vunpack.c.l.b16 %v163
    %v235 = vunpack.c.l.b16 %v164
    %v236 = vunpack.c.l.b16 %v165
    %v237 = vunpack.c.l.b16 %v166
    %v238 = vunpack.c.l.b16 %v167
    %v239 = vunpack.c.l.b16 %v168
    %v240 = vunpack.c.l.b16 %v169
    %v241 = vunpack.c.l.b16 %v170
    %v242 = vunpack.c.l.b16 %v171
    %v243 = vunpack.c.l.b16 %v172
    %v244 = vunpack.c.l.b16 %v173
    %v245 = vunpack.c.l.b16 %v174
    %v246 = vunpack.c.l.b16 %v175
    %v247 = vunpack.c.l.b16 %v176
    %v248 = vunpack.c.l.b16 %v177
    %v249 = vunpack.c.l.b16 %v178
    %v250 = vunpack.c.l.b16 %v179
    %v251 = vunpack.c.l.b16 %v180
    %v252 = vunpack.c.l.b16 %v181
    %v253 = vunpack.c.l.b16 %v182
    %v254 = vunpack.c.l.b16 %v183
    %v255 = vunpack.c.l.b16 %v184
    %v256 = vunpack.c.l.b16 %v185
    %v257 = vunpack.c.l.b16 %v186
    %v258 = vpack.c.b16 %v227, %v226
    %v259 = vpack.c.b16 %v229, %v228
    %v260 = vpack.c.b16 %v231, %v230
    %v261 = vpack.c.b16 %v233, %v232
    %v262 = vpack.c.b16 %v235, %v234
    %v263 = vpack.c.b16 %v237, %v236
    %v264 = vpack.c.b16 %v239, %v238
    %v265 = vpack.c.b16 %v241, %v240
    %v266 = vpack.c.b16 %v243, %v242
    %v267 = vpack.c.b16 %v245, %v244
    %v268 = vpack.c.b16 %v247, %v246
    %v269 = vpack.c.b16 %v249, %v248
    %v270 = vpack.c.b16 %v251, %v250
    %v271 = vpack.c.b16 %v253, %v252
    %v272 = vpack.c.b16 %v255, %v254
    %v273 = vpack.c.b16 %v257, %v256
    %290 = vmatprep.subr.bf16.mxu0 0
    %291 = vmatpush1.bf16.msra.mxu0 %v258
    %292 = vmatprep.subr.bf16.mxu0 0
    %293 = vmatpush1.bf16.msra.mxu0 %v259
    %294 = vmatprep.subr.bf16.mxu0 0
    %295 = vmatpush1.bf16.msra.mxu0 %v260
    %296 = vmatprep.subr.bf16.mxu0 0
    %297 = vmatpush1.bf16.msra.mxu0 %v261
    %298 = vmatprep.subr.bf16.mxu0 0
    %299 = vmatpush1.bf16.msra.mxu0 %v262
    %300 = vmatprep.subr.bf16.mxu0 0
    %301 = vmatpush1.bf16.msra.mxu0 %v263
    %302 = vmatprep.subr.bf16.mxu0 0
    %303 = vmatpush1.bf16.msra.mxu0 %v264
    %304 = vmatprep.subr.bf16.mxu0 0
    %305 = vmatpush1.bf16.msra.mxu0 %v265
    %306 = vmatprep.subr.bf16.mxu0 0
    %307 = vmatpush1.bf16.msra.mxu0 %v266
    %308 = vmatprep.subr.bf16.mxu0 0
    %309 = vmatpush1.bf16.msra.mxu0 %v267
    %310 = vmatprep.subr.bf16.mxu0 0
    %311 = vmatpush1.bf16.msra.mxu0 %v268
    %312 = vmatprep.subr.bf16.mxu0 0
    %313 = vmatpush1.bf16.msra.mxu0 %v269
    %314 = vmatprep.subr.bf16.mxu0 0
    %315 = vmatpush1.bf16.msra.mxu0 %v270
    %316 = vmatprep.subr.bf16.mxu0 0
    %317 = vmatpush1.bf16.msra.mxu0 %v271
    %318 = vmatprep.subr.bf16.mxu0 0
    %319 = vmatpush1.bf16.msra.mxu0 %v272
    %320 = vmatprep.subr.bf16.mxu0 0
    %321 = vmatpush1.bf16.msra.mxu0 %v273
    %322 = vmatprep.mubr.bf16.mxu0 %v103
    %323 = vmatmul.mubr.bf16.gmra.mrb[0].mxu0 %v154
    %v324 = vpop.f32.mrb[0].mxu0
    %v325 = vadd.f32 %v192, %v324
    %v326 = vpop.f32.mrb[0].mxu0
    %v327 = vpop.f32.mrb[0].mxu0
    %v328 = vadd.f32 %v192, %v327
    %v329 = vpop.f32.mrb[0].mxu0
    %330 = vdwg.mxu0
    %v331 = vmax.f32 %v325, 0.0
    %v332 = vmax.f32 %v328, 0.0
    %v333 = vpack.c.bf16 %v332, %v331
    %334 = vmatprep.subr.bf16.mxu0 0
    %335 = vmatpush1.bf16.msra.mxu0 %v333
    %336 = vmatprep.subr.bf16.mxu0 0
    %337 = vmatpush1.bf16.msra.mxu0 0
    %338 = vmatprep.subr.bf16.mxu0 0
    %339 = vmatpush1.bf16.msra.mxu0 0
    %340 = vmatprep.subr.bf16.mxu0 0
    %341 = vmatpush1.bf16.msra.mxu0 0
    %342 = vmatprep.subr.bf16.mxu0 0
    %343 = vmatpush1.bf16.msra.mxu0 0
    %344 = vmatprep.subr.bf16.mxu0 0
    %345 = vmatpush1.bf16.msra.mxu0 0
    %346 = vmatprep.subr.bf16.mxu0 0
    %347 = vmatpush1.bf16.msra.mxu0 0
    %348 = vmatprep.subr.bf16.mxu0 0
    %349 = vmatpush1.bf16.msra.mxu0 0
    %350 = vmatprep.subr.bf16.mxu0 0
    %351 = vmatpush1.bf16.msra.mxu0 0
    %352 = vmatprep.subr.bf16.mxu0 0
    %353 = vmatpush1.bf16.msra.mxu0 0
    %354 = vmatprep.subr.bf16.mxu0 0
    %355 = vmatpush1.bf16.msra.mxu0 0
    %356 = vmatprep.subr.bf16.mxu0 0
    %357 = vmatpush1.bf16.msra.mxu0 0
    %358 = vmatprep.subr.bf16.mxu0 0
    %359 = vmatpush1.bf16.msra.mxu0 0
    %360 = vmatprep.subr.bf16.mxu0 0
    %361 = vmatpush1.bf16.msra.mxu0 0
    %362 = vmatprep.subr.bf16.mxu0 0
    %363 = vmatpush1.bf16.msra.mxu0 0
    %364 = vmatprep.subr.bf16.mxu0 0
    %365 = vmatpush1.bf16.msra.mxu0 0
    %366 = vmatprep.mubr.bf16.mxu0 0
    %367 = vmatmul.mubr.bf16.gmra.mrb[0].mxu0 %v111
    %v368 = vpop.f32.mrb[0].mxu0
    %v369 = vadd.f32 0.0, %v368
    %v370 = vpop.f32.mrb[0].mxu0
    %v371 = vpop.f32.mrb[0].mxu0
    %v372 = vadd.f32 0.0, %v371
    %v373 = vpop.f32.mrb[0].mxu0
    %374 = vdwg.mxu0
    %v375 = vpack.c.bf16 %v372, %v369
    %s376 = scalar_lea.vmem %s6, 128
    %v377 = vld [vmem:[%s376] sm:$0xf]
    %v378 = vld [vmem:[%s376 + $0x4] sm:$0xf]
    %v379 = vld [vmem:[%s376 + $0x8] sm:$0xf]
    %v380 = vld [vmem:[%s376 + $0xc] sm:$0xf]
    %v381 = vld [vmem:[%s376 + $0x10] sm:$0xf]
    %v382 = vld [vmem:[%s376 + $0x14] sm:$0xf]
    %v383 = vld [vmem:[%s376 + $0x18] sm:$0xf]
    %v384 = vld [vmem:[%s376 + $0x1c] sm:$0xf]
    %v385 = vld [vmem:[%s376 + $0x20] sm:$0xf]
    %v386 = vld [vmem:[%s376 + $0x24] sm:$0xf]
    %v387 = vld [vmem:[%s376 + $0x28] sm:$0xf]
    %v388 = vld [vmem:[%s376 + $0x2c] sm:$0xf]
    %v389 = vld [vmem:[%s376 + $0x30] sm:$0xf]
    %v390 = vld [vmem:[%s376 + $0x34] sm:$0xf]
    %v391 = vld [vmem:[%s376 + $0x38] sm:$0xf]
    %v392 = vld [vmem:[%s376 + $0x3c] sm:$0xf]
    %v393 = vld [vmem:[%s376 + $0x40] sm:$0xf]
    %v394 = vld [vmem:[%s376 + $0x44] sm:$0xf]
    %v395 = vld [vmem:[%s376 + $0x48] sm:$0xf]
    %v396 = vld [vmem:[%s376 + $0x4c] sm:$0xf]
    %v397 = vld [vmem:[%s376 + $0x50] sm:$0xf]
    %v398 = vld [vmem:[%s376 + $0x54] sm:$0xf]
    %v399 = vld [vmem:[%s376 + $0x58] sm:$0xf]
    %v400 = vld [vmem:[%s376 + $0x5c] sm:$0xf]
    %v401 = vld [vmem:[%s376 + $0x60] sm:$0xf]
    %v402 = vld [vmem:[%s376 + $0x64] sm:$0xf]
    %v403 = vld [vmem:[%s376 + $0x68] sm:$0xf]
    %v404 = vld [vmem:[%s376 + $0x6c] sm:$0xf]
    %v405 = vld [vmem:[%s376 + $0x70] sm:$0xf]
    %v406 = vld [vmem:[%s376 + $0x74] sm:$0xf]
    %v407 = vld [vmem:[%s376 + $0x78] sm:$0xf]
    %v408 = vld [vmem:[%s376 + $0x7c] sm:$0xf]
    %s409 = scalar_lea.vmem %s7, 1
    %v410 = vld [vmem:[%s409] sm:$0x1]
    %v412 = vlaneseq
    %v413 = vshrl.u32 %v412, 7
    %v414 = vsub.s32 0, %v413
    %v415 = vrot.slane %v410, %v414
    %v449 = vunpack.c.l.b16 %v377
    %v450 = vunpack.c.l.b16 %v378
    %v451 = vunpack.c.l.b16 %v379
    %v452 = vunpack.c.l.b16 %v380
    %v453 = vunpack.c.l.b16 %v381
    %v454 = vunpack.c.l.b16 %v382
    %v455 = vunpack.c.l.b16 %v383
    %v456 = vunpack.c.l.b16 %v384
    %v457 = vunpack.c.l.b16 %v385
    %v458 = vunpack.c.l.b16 %v386
    %v459 = vunpack.c.l.b16 %v387
    %v460 = vunpack.c.l.b16 %v388
    %v461 = vunpack.c.l.b16 %v389
    %v462 = vunpack.c.l.b16 %v390
    %v463 = vunpack.c.l.b16 %v391
    %v464 = vunpack.c.l.b16 %v392
    %v465 = vunpack.c.l.b16 %v393
    %v466 = vunpack.c.l.b16 %v394
    %v467 = vunpack.c.l.b16 %v395
    %v468 = vunpack.c.l.b16 %v396
    %v469 = vunpack.c.l.b16 %v397
    %v470 = vunpack.c.l.b16 %v398
    %v471 = vunpack.c.l.b16 %v399
    %v472 = vunpack.c.l.b16 %v400
    %v473 = vunpack.c.l.b16 %v401
    %v474 = vunpack.c.l.b16 %v402
    %v475 = vunpack.c.l.b16 %v403
    %v476 = vunpack.c.l.b16 %v404
    %v477 = vunpack.c.l.b16 %v405
    %v478 = vunpack.c.l.b16 %v406
    %v479 = vunpack.c.l.b16 %v407
    %v480 = vunpack.c.l.b16 %v408
    %v481 = vpack.c.b16 %v450, %v449
    %v482 = vpack.c.b16 %v452, %v451
    %v483 = vpack.c.b16 %v454, %v453
    %v484 = vpack.c.b16 %v456, %v455
    %v485 = vpack.c.b16 %v458, %v457
    %v486 = vpack.c.b16 %v460, %v459
    %v487 = vpack.c.b16 %v462, %v461
    %v488 = vpack.c.b16 %v464, %v463
    %v489 = vpack.c.b16 %v466, %v465
    %v490 = vpack.c.b16 %v468, %v467
    %v491 = vpack.c.b16 %v470, %v469
    %v492 = vpack.c.b16 %v472, %v471
    %v493 = vpack.c.b16 %v474, %v473
    %v494 = vpack.c.b16 %v476, %v475
    %v495 = vpack.c.b16 %v478, %v477
    %v496 = vpack.c.b16 %v480, %v479
    %513 = vmatprep.subr.bf16.mxu0 0
    %514 = vmatpush1.bf16.msra.mxu0 %v481
    %515 = vmatprep.subr.bf16.mxu0 0
    %516 = vmatpush1.bf16.msra.mxu0 %v482
    %517 = vmatprep.subr.bf16.mxu0 0
    %518 = vmatpush1.bf16.msra.mxu0 %v483
    %519 = vmatprep.subr.bf16.mxu0 0
    %520 = vmatpush1.bf16.msra.mxu0 %v484
    %521 = vmatprep.subr.bf16.mxu0 0
    %522 = vmatpush1.bf16.msra.mxu0 %v485
    %523 = vmatprep.subr.bf16.mxu0 0
    %524 = vmatpush1.bf16.msra.mxu0 %v486
    %525 = vmatprep.subr.bf16.mxu0 0
    %526 = vmatpush1.bf16.msra.mxu0 %v487
    %527 = vmatprep.subr.bf16.mxu0 0
    %528 = vmatpush1.bf16.msra.mxu0 %v488
    %529 = vmatprep.subr.bf16.mxu0 0
    %530 = vmatpush1.bf16.msra.mxu0 %v489
    %531 = vmatprep.subr.bf16.mxu0 0
    %532 = vmatpush1.bf16.msra.mxu0 %v490
    %533 = vmatprep.subr.bf16.mxu0 0
    %534 = vmatpush1.bf16.msra.mxu0 %v491
    %535 = vmatprep.subr.bf16.mxu0 0
    %536 = vmatpush1.bf16.msra.mxu0 %v492
    %537 = vmatprep.subr.bf16.mxu0 0
    %538 = vmatpush1.bf16.msra.mxu0 %v493
    %539 = vmatprep.subr.bf16.mxu0 0
    %540 = vmatpush1.bf16.msra.mxu0 %v494
    %541 = vmatprep.subr.bf16.mxu0 0
    %542 = vmatpush1.bf16.msra.mxu0 %v495
    %543 = vmatprep.subr.bf16.mxu0 0
    %544 = vmatpush1.bf16.msra.mxu0 %v496
    %545 = vmatprep.mubr.bf16.mxu0 %v333
    %546 = vmatmul.mubr.bf16.gmra.mrb[0].mxu0 %v375
    %v547 = vpop.f32.mrb[0].mxu0
    %v548 = vadd.f32 %v415, %v547
    %v549 = vpop.f32.mrb[0].mxu0
    %v550 = vpop.f32.mrb[0].mxu0
    %v551 = vadd.f32 %v415, %v550
    %v552 = vpop.f32.mrb[0].mxu0
    %553 = vdwg.mxu0
    %v554 = vmax.f32 %v548, 0.0
    %v555 = vmax.f32 %v551, 0.0
    %v556 = vpack.c.bf16 %v555, %v554
    %557 = vmatprep.subr.bf16.mxu0 0
    %558 = vmatpush1.bf16.msra.mxu0 %v556
    %559 = vmatprep.subr.bf16.mxu0 0
    %560 = vmatpush1.bf16.msra.mxu0 0
    %561 = vmatprep.subr.bf16.mxu0 0
    %562 = vmatpush1.bf16.msra.mxu0 0
    %563 = vmatprep.subr.bf16.mxu0 0
    %564 = vmatpush1.bf16.msra.mxu0 0
    %565 = vmatprep.subr.bf16.mxu0 0
    %566 = vmatpush1.bf16.msra.mxu0 0
    %567 = vmatprep.subr.bf16.mxu0 0
    %568 = vmatpush1.bf16.msra.mxu0 0
    %569 = vmatprep.subr.bf16.mxu0 0
    %570 = vmatpush1.bf16.msra.mxu0 0
    %571 = vmatprep.subr.bf16.mxu0 0
    %572 = vmatpush1.bf16.msra.mxu0 0
    %573 = vmatprep.subr.bf16.mxu0 0
    %574 = vmatpush1.bf16.msra.mxu0 0
    %575 = vmatprep.subr.bf16.mxu0 0
    %576 = vmatpush1.bf16.msra.mxu0 0
    %577 = vmatprep.subr.bf16.mxu0 0
    %578 = vmatpush1.bf16.msra.mxu0 0
    %579 = vmatprep.subr.bf16.mxu0 0
    %580 = vmatpush1.bf16.msra.mxu0 0
    %581 = vmatprep.subr.bf16.mxu0 0
    %582 = vmatpush1.bf16.msra.mxu0 0
    %583 = vmatprep.subr.bf16.mxu0 0
    %584 = vmatpush1.bf16.msra.mxu0 0
    %585 = vmatprep.subr.bf16.mxu0 0
    %586 = vmatpush1.bf16.msra.mxu0 0
    %587 = vmatprep.subr.bf16.mxu0 0
    %588 = vmatpush1.bf16.msra.mxu0 0
    %589 = vmatprep.mubr.bf16.mxu0 0
    %590 = vmatmul.mubr.bf16.gmra.mrb[0].mxu0 %v111
    %v591 = vpop.f32.mrb[0].mxu0
    %v592 = vadd.f32 0.0, %v591
    %v593 = vpop.f32.mrb[0].mxu0
    %v594 = vpop.f32.mrb[0].mxu0
    %v595 = vadd.f32 0.0, %v594
    %v596 = vpop.f32.mrb[0].mxu0
    %597 = vdwg.mxu0
    %v598 = vpack.c.bf16 %v595, %v592
    %s599 = scalar_lea.vmem %s6, 256
    %v600 = vld [vmem:[%s599] sm:$0xf]
    %v601 = vld [vmem:[%s599 + $0x4] sm:$0xf]
    %v602 = vld [vmem:[%s599 + $0x8] sm:$0xf]
    %v603 = vld [vmem:[%s599 + $0xc] sm:$0xf]
    %v604 = vld [vmem:[%s599 + $0x10] sm:$0xf]
    %v605 = vld [vmem:[%s599 + $0x14] sm:$0xf]
    %v606 = vld [vmem:[%s599 + $0x18] sm:$0xf]
    %v607 = vld [vmem:[%s599 + $0x1c] sm:$0xf]
    %v608 = vld [vmem:[%s599 + $0x20] sm:$0xf]
    %v609 = vld [vmem:[%s599 + $0x24] sm:$0xf]
    %v610 = vld [vmem:[%s599 + $0x28] sm:$0xf]
    %v611 = vld [vmem:[%s599 + $0x2c] sm:$0xf]
    %v612 = vld [vmem:[%s599 + $0x30] sm:$0xf]
    %v613 = vld [vmem:[%s599 + $0x34] sm:$0xf]
    %v614 = vld [vmem:[%s599 + $0x38] sm:$0xf]
    %v615 = vld [vmem:[%s599 + $0x3c] sm:$0xf]
    %v616 = vld [vmem:[%s599 + $0x40] sm:$0xf]
    %v617 = vld [vmem:[%s599 + $0x44] sm:$0xf]
    %v618 = vld [vmem:[%s599 + $0x48] sm:$0xf]
    %v619 = vld [vmem:[%s599 + $0x4c] sm:$0xf]
    %v620 = vld [vmem:[%s599 + $0x50] sm:$0xf]
    %v621 = vld [vmem:[%s599 + $0x54] sm:$0xf]
    %v622 = vld [vmem:[%s599 + $0x58] sm:$0xf]
    %v623 = vld [vmem:[%s599 + $0x5c] sm:$0xf]
    %v624 = vld [vmem:[%s599 + $0x60] sm:$0xf]
    %v625 = vld [vmem:[%s599 + $0x64] sm:$0xf]
    %v626 = vld [vmem:[%s599 + $0x68] sm:$0xf]
    %v627 = vld [vmem:[%s599 + $0x6c] sm:$0xf]
    %v628 = vld [vmem:[%s599 + $0x70] sm:$0xf]
    %v629 = vld [vmem:[%s599 + $0x74] sm:$0xf]
    %v630 = vld [vmem:[%s599 + $0x78] sm:$0xf]
    %v631 = vld [vmem:[%s599 + $0x7c] sm:$0xf]
    %s632 = scalar_lea.vmem %s7, 2
    %v633 = vld [vmem:[%s632] sm:$0x1]
    %v635 = vlaneseq
    %v636 = vshrl.u32 %v635, 7
    %v637 = vsub.s32 0, %v636
    %v638 = vrot.slane %v633, %v637
    %v672 = vunpack.c.l.b16 %v600
    %v673 = vunpack.c.l.b16 %v601
    %v674 = vunpack.c.l.b16 %v602
    %v675 = vunpack.c.l.b16 %v603
    %v676 = vunpack.c.l.b16 %v604
    %v677 = vunpack.c.l.b16 %v605
    %v678 = vunpack.c.l.b16 %v606
    %v679 = vunpack.c.l.b16 %v607
    %v680 = vunpack.c.l.b16 %v608
    %v681 = vunpack.c.l.b16 %v609
    %v682 = vunpack.c.l.b16 %v610
    %v683 = vunpack.c.l.b16 %v611
    %v684 = vunpack.c.l.b16 %v612
    %v685 = vunpack.c.l.b16 %v613
    %v686 = vunpack.c.l.b16 %v614
    %v687 = vunpack.c.l.b16 %v615
    %v688 = vunpack.c.l.b16 %v616
    %v689 = vunpack.c.l.b16 %v617
    %v690 = vunpack.c.l.b16 %v618
    %v691 = vunpack.c.l.b16 %v619
    %v692 = vunpack.c.l.b16 %v620
    %v693 = vunpack.c.l.b16 %v621
    %v694 = vunpack.c.l.b16 %v622
    %v695 = vunpack.c.l.b16 %v623
    %v696 = vunpack.c.l.b16 %v624
    %v697 = vunpack.c.l.b16 %v625
    %v698 = vunpack.c.l.b16 %v626
    %v699 = vunpack.c.l.b16 %v627
    %v700 = vunpack.c.l.b16 %v628
    %v701 = vunpack.c.l.b16 %v629
    %v702 = vunpack.c.l.b16 %v630
    %v703 = vunpack.c.l.b16 %v631
    %v704 = vpack.c.b16 %v673, %v672
    %v705 = vpack.c.b16 %v675, %v674
    %v706 = vpack.c.b16 %v677, %v676
    %v707 = vpack.c.b16 %v679, %v678
    %v708 = vpack.c.b16 %v681, %v680
    %v709 = vpack.c.b16 %v683, %v682
    %v710 = vpack.c.b16 %v685, %v684
    %v711 = vpack.c.b16 %v687, %v686
    %v712 = vpack.c.b16 %v689, %v688
    %v713 = vpack.c.b16 %v691, %v690
    %v714 = vpack.c.b16 %v693, %v692
    %v715 = vpack.c.b16 %v695, %v694
    %v716 = vpack.c.b16 %v697, %v696
    %v717 = vpack.c.b16 %v699, %v698
    %v718 = vpack.c.b16 %v701, %v700
    %v719 = vpack.c.b16 %v703, %v702
    %736 = vmatprep.subr.bf16.mxu0 0
    %737 = vmatpush1.bf16.msra.mxu0 %v704
    %738 = vmatprep.subr.bf16.mxu0 0
    %739 = vmatpush1.bf16.msra.mxu0 %v705
    %740 = vmatprep.subr.bf16.mxu0 0
    %741 = vmatpush1.bf16.msra.mxu0 %v706
    %742 = vmatprep.subr.bf16.mxu0 0
    %743 = vmatpush1.bf16.msra.mxu0 %v707
    %744 = vmatprep.subr.bf16.mxu0 0
    %745 = vmatpush1.bf16.msra.mxu0 %v708
    %746 = vmatprep.subr.bf16.mxu0 0
    %747 = vmatpush1.bf16.msra.mxu0 %v709
    %748 = vmatprep.subr.bf16.mxu0 0
    %749 = vmatpush1.bf16.msra.mxu0 %v710
    %750 = vmatprep.subr.bf16.mxu0 0
    %751 = vmatpush1.bf16.msra.mxu0 %v711
    %752 = vmatprep.subr.bf16.mxu0 0
    %753 = vmatpush1.bf16.msra.mxu0 %v712
    %754 = vmatprep.subr.bf16.mxu0 0
    %755 = vmatpush1.bf16.msra.mxu0 %v713
    %756 = vmatprep.subr.bf16.mxu0 0
    %757 = vmatpush1.bf16.msra.mxu0 %v714
    %758 = vmatprep.subr.bf16.mxu0 0
    %759 = vmatpush1.bf16.msra.mxu0 %v715
    %760 = vmatprep.subr.bf16.mxu0 0
    %761 = vmatpush1.bf16.msra.mxu0 %v716
    %762 = vmatprep.subr.bf16.mxu0 0
    %763 = vmatpush1.bf16.msra.mxu0 %v717
    %764 = vmatprep.subr.bf16.mxu0 0
    %765 = vmatpush1.bf16.msra.mxu0 %v718
    %766 = vmatprep.subr.bf16.mxu0 0
    %767 = vmatpush1.bf16.msra.mxu0 %v719
    %768 = vmatprep.mubr.bf16.mxu0 %v556
    %769 = vmatmul.mubr.bf16.gmra.mrb[0].mxu0 %v598
    %v770 = vpop.f32.mrb[0].mxu0
    %v771 = vadd.f32 %v638, %v770
    %v772 = vpop.f32.mrb[0].mxu0
    %v773 = vpop.f32.mrb[0].mxu0
    %v774 = vadd.f32 %v638, %v773
    %v775 = vpop.f32.mrb[0].mxu0
    %776 = vdwg.mxu0
    %v777 = vmax.f32 %v771, 0.0
    %v778 = vmax.f32 %v774, 0.0
    %v779 = vpack.c.bf16 %v778, %v777
    %780 = vmatprep.subr.bf16.mxu0 0
    %781 = vmatpush1.bf16.msra.mxu0 %v779
    %782 = vmatprep.subr.bf16.mxu0 0
    %783 = vmatpush1.bf16.msra.mxu0 0
    %784 = vmatprep.subr.bf16.mxu0 0
    %785 = vmatpush1.bf16.msra.mxu0 0
    %786 = vmatprep.subr.bf16.mxu0 0
    %787 = vmatpush1.bf16.msra.mxu0 0
    %788 = vmatprep.subr.bf16.mxu0 0
    %789 = vmatpush1.bf16.msra.mxu0 0
    %790 = vmatprep.subr.bf16.mxu0 0
    %791 = vmatpush1.bf16.msra.mxu0 0
    %792 = vmatprep.subr.bf16.mxu0 0
    %793 = vmatpush1.bf16.msra.mxu0 0
    %794 = vmatprep.subr.bf16.mxu0 0
    %795 = vmatpush1.bf16.msra.mxu0 0
    %796 = vmatprep.subr.bf16.mxu0 0
    %797 = vmatpush1.bf16.msra.mxu0 0
    %798 = vmatprep.subr.bf16.mxu0 0
    %799 = vmatpush1.bf16.msra.mxu0 0
    %800 = vmatprep.subr.bf16.mxu0 0
    %801 = vmatpush1.bf16.msra.mxu0 0
    %802 = vmatprep.subr.bf16.mxu0 0
    %803 = vmatpush1.bf16.msra.mxu0 0
    %804 = vmatprep.subr.bf16.mxu0 0
    %805 = vmatpush1.bf16.msra.mxu0 0
    %806 = vmatprep.subr.bf16.mxu0 0
    %807 = vmatpush1.bf16.msra.mxu0 0
    %808 = vmatprep.subr.bf16.mxu0 0
    %809 = vmatpush1.bf16.msra.mxu0 0
    %810 = vmatprep.subr.bf16.mxu0 0
    %811 = vmatpush1.bf16.msra.mxu0 0
    %812 = vmatprep.mubr.bf16.mxu0 0
    %813 = vmatmul.mubr.bf16.gmra.mrb[0].mxu0 %v111
    %v814 = vpop.f32.mrb[0].mxu0
    %v815 = vadd.f32 0.0, %v814
    %v816 = vpop.f32.mrb[0].mxu0
    %v817 = vpop.f32.mrb[0].mxu0
    %v818 = vadd.f32 0.0, %v817
    %v819 = vpop.f32.mrb[0].mxu0
    %820 = vdwg.mxu0
    %v821 = vpack.c.bf16 %v818, %v815
    %s822 = scalar_lea.vmem %s6, 384
    %v823 = vld [vmem:[%s822] sm:$0xf]
    %v824 = vld [vmem:[%s822 + $0x4] sm:$0xf]
    %v825 = vld [vmem:[%s822 + $0x8] sm:$0xf]
    %v826 = vld [vmem:[%s822 + $0xc] sm:$0xf]
    %v827 = vld [vmem:[%s822 + $0x10] sm:$0xf]
    %v828 = vld [vmem:[%s822 + $0x14] sm:$0xf]
    %v829 = vld [vmem:[%s822 + $0x18] sm:$0xf]
    %v830 = vld [vmem:[%s822 + $0x1c] sm:$0xf]
    %v831 = vld [vmem:[%s822 + $0x20] sm:$0xf]
    %v832 = vld [vmem:[%s822 + $0x24] sm:$0xf]
    %v833 = vld [vmem:[%s822 + $0x28] sm:$0xf]
    %v834 = vld [vmem:[%s822 + $0x2c] sm:$0xf]
    %v835 = vld [vmem:[%s822 + $0x30] sm:$0xf]
    %v836 = vld [vmem:[%s822 + $0x34] sm:$0xf]
    %v837 = vld [vmem:[%s822 + $0x38] sm:$0xf]
    %v838 = vld [vmem:[%s822 + $0x3c] sm:$0xf]
    %v839 = vld [vmem:[%s822 + $0x40] sm:$0xf]
    %v840 = vld [vmem:[%s822 + $0x44] sm:$0xf]
    %v841 = vld [vmem:[%s822 + $0x48] sm:$0xf]
    %v842 = vld [vmem:[%s822 + $0x4c] sm:$0xf]
    %v843 = vld [vmem:[%s822 + $0x50] sm:$0xf]
    %v844 = vld [vmem:[%s822 + $0x54] sm:$0xf]
    %v845 = vld [vmem:[%s822 + $0x58] sm:$0xf]
    %v846 = vld [vmem:[%s822 + $0x5c] sm:$0xf]
    %v847 = vld [vmem:[%s822 + $0x60] sm:$0xf]
    %v848 = vld [vmem:[%s822 + $0x64] sm:$0xf]
    %v849 = vld [vmem:[%s822 + $0x68] sm:$0xf]
    %v850 = vld [vmem:[%s822 + $0x6c] sm:$0xf]
    %v851 = vld [vmem:[%s822 + $0x70] sm:$0xf]
    %v852 = vld [vmem:[%s822 + $0x74] sm:$0xf]
    %v853 = vld [vmem:[%s822 + $0x78] sm:$0xf]
    %v854 = vld [vmem:[%s822 + $0x7c] sm:$0xf]
    %s855 = scalar_lea.vmem %s7, 3
    %v856 = vld [vmem:[%s855] sm:$0x1]
    %v858 = vlaneseq
    %v859 = vshrl.u32 %v858, 7
    %v860 = vsub.s32 0, %v859
    %v861 = vrot.slane %v856, %v860
    %v895 = vunpack.c.l.b16 %v823
    %v896 = vunpack.c.l.b16 %v824
    %v897 = vunpack.c.l.b16 %v825
    %v898 = vunpack.c.l.b16 %v826
    %v899 = vunpack.c.l.b16 %v827
    %v900 = vunpack.c.l.b16 %v828
    %v901 = vunpack.c.l.b16 %v829
    %v902 = vunpack.c.l.b16 %v830
    %v903 = vunpack.c.l.b16 %v831
    %v904 = vunpack.c.l.b16 %v832
    %v905 = vunpack.c.l.b16 %v833
    %v906 = vunpack.c.l.b16 %v834
    %v907 = vunpack.c.l.b16 %v835
    %v908 = vunpack.c.l.b16 %v836
    %v909 = vunpack.c.l.b16 %v837
    %v910 = vunpack.c.l.b16 %v838
    %v911 = vunpack.c.l.b16 %v839
    %v912 = vunpack.c.l.b16 %v840
    %v913 = vunpack.c.l.b16 %v841
    %v914 = vunpack.c.l.b16 %v842
    %v915 = vunpack.c.l.b16 %v843
    %v916 = vunpack.c.l.b16 %v844
    %v917 = vunpack.c.l.b16 %v845
    %v918 = vunpack.c.l.b16 %v846
    %v919 = vunpack.c.l.b16 %v847
    %v920 = vunpack.c.l.b16 %v848
    %v921 = vunpack.c.l.b16 %v849
    %v922 = vunpack.c.l.b16 %v850
    %v923 = vunpack.c.l.b16 %v851
    %v924 = vunpack.c.l.b16 %v852
    %v925 = vunpack.c.l.b16 %v853
    %v926 = vunpack.c.l.b16 %v854
    %v927 = vpack.c.b16 %v896, %v895
    %v928 = vpack.c.b16 %v898, %v897
    %v929 = vpack.c.b16 %v900, %v899
    %v930 = vpack.c.b16 %v902, %v901
    %v931 = vpack.c.b16 %v904, %v903
    %v932 = vpack.c.b16 %v906, %v905
    %v933 = vpack.c.b16 %v908, %v907
    %v934 = vpack.c.b16 %v910, %v909
    %v935 = vpack.c.b16 %v912, %v911
    %v936 = vpack.c.b16 %v914, %v913
    %v937 = vpack.c.b16 %v916, %v915
    %v938 = vpack.c.b16 %v918, %v917
    %v939 = vpack.c.b16 %v920, %v919
    %v940 = vpack.c.b16 %v922, %v921
    %v941 = vpack.c.b16 %v924, %v923
    %v942 = vpack.c.b16 %v926, %v925
    %959 = vmatprep.subr.bf16.mxu0 0
    %960 = vmatpush1.bf16.msra.mxu0 %v927
    %961 = vmatprep.subr.bf16.mxu0 0
    %962 = vmatpush1.bf16.msra.mxu0 %v928
    %963 = vmatprep.subr.bf16.mxu0 0
    %964 = vmatpush1.bf16.msra.mxu0 %v929
    %965 = vmatprep.subr.bf16.mxu0 0
    %966 = vmatpush1.bf16.msra.mxu0 %v930
    %967 = vmatprep.subr.bf16.mxu0 0
    %968 = vmatpush1.bf16.msra.mxu0 %v931
    %969 = vmatprep.subr.bf16.mxu0 0
    %970 = vmatpush1.bf16.msra.mxu0 %v932
    %971 = vmatprep.subr.bf16.mxu0 0
    %972 = vmatpush1.bf16.msra.mxu0 %v933
    %973 = vmatprep.subr.bf16.mxu0 0
    %974 = vmatpush1.bf16.msra.mxu0 %v934
    %975 = vmatprep.subr.bf16.mxu0 0
    %976 = vmatpush1.bf16.msra.mxu0 %v935
    %977 = vmatprep.subr.bf16.mxu0 0
    %978 = vmatpush1.bf16.msra.mxu0 %v936
    %979 = vmatprep.subr.bf16.mxu0 0
    %980 = vmatpush1.bf16.msra.mxu0 %v937
    %981 = vmatprep.subr.bf16.mxu0 0
    %982 = vmatpush1.bf16.msra.mxu0 %v938
    %983 = vmatprep.subr.bf16.mxu0 0
    %984 = vmatpush1.bf16.msra.mxu0 %v939
    %985 = vmatprep.subr.bf16.mxu0 0
    %986 = vmatpush1.bf16.msra.mxu0 %v940
    %987 = vmatprep.subr.bf16.mxu0 0
    %988 = vmatpush1.bf16.msra.mxu0 %v941
    %989 = vmatprep.subr.bf16.mxu0 0
    %990 = vmatpush1.bf16.msra.mxu0 %v942
    %991 = vmatprep.mubr.bf16.mxu0 %v779
    %992 = vmatmul.mubr.bf16.gmra.mrb[0].mxu0 %v821
    %v993 = vpop.f32.mrb[0].mxu0
    %v994 = vadd.f32 %v861, %v993
    %v995 = vpop.f32.mrb[0].mxu0
    %v996 = vpop.f32.mrb[0].mxu0
    %v997 = vadd.f32 %v861, %v996
    %v998 = vpop.f32.mrb[0].mxu0
    %999 = vdwg.mxu0
    %v1000 = vmax.f32 %v994, 0.0
    %v1001 = vmax.f32 %v997, 0.0
    %v1002 = vpack.c.bf16 %v1001, %v1000
    %1003 = vmatprep.subr.bf16.mxu0 0
    %1004 = vmatpush1.bf16.msra.mxu0 %v1002
    %1005 = vmatprep.subr.bf16.mxu0 0
    %1006 = vmatpush1.bf16.msra.mxu0 0
    %1007 = vmatprep.subr.bf16.mxu0 0
    %1008 = vmatpush1.bf16.msra.mxu0 0
    %1009 = vmatprep.subr.bf16.mxu0 0
    %1010 = vmatpush1.bf16.msra.mxu0 0
    %1011 = vmatprep.subr.bf16.mxu0 0
    %1012 = vmatpush1.bf16.msra.mxu0 0
    %1013 = vmatprep.subr.bf16.mxu0 0
    %1014 = vmatpush1.bf16.msra.mxu0 0
    %1015 = vmatprep.subr.bf16.mxu0 0
    %1016 = vmatpush1.bf16.msra.mxu0 0
    %1017 = vmatprep.subr.bf16.mxu0 0
    %1018 = vmatpush1.bf16.msra.mxu0 0
    %1019 = vmatprep.subr.bf16.mxu0 0
    %1020 = vmatpush1.bf16.msra.mxu0 0
    %1021 = vmatprep.subr.bf16.mxu0 0
    %1022 = vmatpush1.bf16.msra.mxu0 0
    %1023 = vmatprep.subr.bf16.mxu0 0
    %1024 = vmatpush1.bf16.msra.mxu0 0
    %1025 = vmatprep.subr.bf16.mxu0 0
    %1026 = vmatpush1.bf16.msra.mxu0 0
    %1027 = vmatprep.subr.bf16.mxu0 0
    %1028 = vmatpush1.bf16.msra.mxu0 0
    %1029 = vmatprep.subr.bf16.mxu0 0
    %1030 = vmatpush1.bf16.msra.mxu0 0
    %1031 = vmatprep.subr.bf16.mxu0 0
    %1032 = vmatpush1.bf16.msra.mxu0 0
    %1033 = vmatprep.subr.bf16.mxu0 0
    %1034 = vmatpush1.bf16.msra.mxu0 0
    %1035 = vmatprep.mubr.bf16.mxu0 0
    %1036 = vmatmul.mubr.bf16.gmra.mrb[0].mxu0 %v111
    %v1037 = vpop.f32.mrb[0].mxu0
    %v1038 = vadd.f32 0.0, %v1037
    %v1039 = vpop.f32.mrb[0].mxu0
    %v1040 = vpop.f32.mrb[0].mxu0
    %v1041 = vadd.f32 0.0, %v1040
    %v1042 = vpop.f32.mrb[0].mxu0
    %1043 = vdwg.mxu0
    %v1044 = vpack.c.bf16 %v1041, %v1038
    %s1045 = scalar_lea.vmem %s6, 512
    %v1046 = vld [vmem:[%s1045] sm:$0xf]
    %v1047 = vld [vmem:[%s1045 + $0x4] sm:$0xf]
    %v1048 = vld [vmem:[%s1045 + $0x8] sm:$0xf]
    %v1049 = vld [vmem:[%s1045 + $0xc] sm:$0xf]
    %v1050 = vld [vmem:[%s1045 + $0x10] sm:$0xf]
    %v1051 = vld [vmem:[%s1045 + $0x14] sm:$0xf]
    %v1052 = vld [vmem:[%s1045 + $0x18] sm:$0xf]
    %v1053 = vld [vmem:[%s1045 + $0x1c] sm:$0xf]
    %v1054 = vld [vmem:[%s1045 + $0x20] sm:$0xf]
    %v1055 = vld [vmem:[%s1045 + $0x24] sm:$0xf]
    %v1056 = vld [vmem:[%s1045 + $0x28] sm:$0xf]
    %v1057 = vld [vmem:[%s1045 + $0x2c] sm:$0xf]
    %v1058 = vld [vmem:[%s1045 + $0x30] sm:$0xf]
    %v1059 = vld [vmem:[%s1045 + $0x34] sm:$0xf]
    %v1060 = vld [vmem:[%s1045 + $0x38] sm:$0xf]
    %v1061 = vld [vmem:[%s1045 + $0x3c] sm:$0xf]
    %v1062 = vld [vmem:[%s1045 + $0x40] sm:$0xf]
    %v1063 = vld [vmem:[%s1045 + $0x44] sm:$0xf]
    %v1064 = vld [vmem:[%s1045 + $0x48] sm:$0xf]
    %v1065 = vld [vmem:[%s1045 + $0x4c] sm:$0xf]
    %v1066 = vld [vmem:[%s1045 + $0x50] sm:$0xf]
    %v1067 = vld [vmem:[%s1045 + $0x54] sm:$0xf]
    %v1068 = vld [vmem:[%s1045 + $0x58] sm:$0xf]
    %v1069 = vld [vmem:[%s1045 + $0x5c] sm:$0xf]
    %v1070 = vld [vmem:[%s1045 + $0x60] sm:$0xf]
    %v1071 = vld [vmem:[%s1045 + $0x64] sm:$0xf]
    %v1072 = vld [vmem:[%s1045 + $0x68] sm:$0xf]
    %v1073 = vld [vmem:[%s1045 + $0x6c] sm:$0xf]
    %v1074 = vld [vmem:[%s1045 + $0x70] sm:$0xf]
    %v1075 = vld [vmem:[%s1045 + $0x74] sm:$0xf]
    %v1076 = vld [vmem:[%s1045 + $0x78] sm:$0xf]
    %v1077 = vld [vmem:[%s1045 + $0x7c] sm:$0xf]
    %s1078 = scalar_lea.vmem %s7, 4
    %v1079 = vld [vmem:[%s1078] sm:$0x1]
    %v1081 = vlaneseq
    %v1082 = vshrl.u32 %v1081, 7
    %v1083 = vsub.s32 0, %v1082
    %v1084 = vrot.slane %v1079, %v1083
    %v1118 = vunpack.c.l.b16 %v1046
    %v1119 = vunpack.c.l.b16 %v1047
    %v1120 = vunpack.c.l.b16 %v1048
    %v1121 = vunpack.c.l.b16 %v1049
    %v1122 = vunpack.c.l.b16 %v1050
    %v1123 = vunpack.c.l.b16 %v1051
    %v1124 = vunpack.c.l.b16 %v1052
    %v1125 = vunpack.c.l.b16 %v1053
    %v1126 = vunpack.c.l.b16 %v1054
    %v1127 = vunpack.c.l.b16 %v1055
    %v1128 = vunpack.c.l.b16 %v1056
    %v1129 = vunpack.c.l.b16 %v1057
    %v1130 = vunpack.c.l.b16 %v1058
    %v1131 = vunpack.c.l.b16 %v1059
    %v1132 = vunpack.c.l.b16 %v1060
    %v1133 = vunpack.c.l.b16 %v1061
    %v1134 = vunpack.c.l.b16 %v1062
    %v1135 = vunpack.c.l.b16 %v1063
    %v1136 = vunpack.c.l.b16 %v1064
    %v1137 = vunpack.c.l.b16 %v1065
    %v1138 = vunpack.c.l.b16 %v1066
    %v1139 = vunpack.c.l.b16 %v1067
    %v1140 = vunpack.c.l.b16 %v1068
    %v1141 = vunpack.c.l.b16 %v1069
    %v1142 = vunpack.c.l.b16 %v1070
    %v1143 = vunpack.c.l.b16 %v1071
    %v1144 = vunpack.c.l.b16 %v1072
    %v1145 = vunpack.c.l.b16 %v1073
    %v1146 = vunpack.c.l.b16 %v1074
    %v1147 = vunpack.c.l.b16 %v1075
    %v1148 = vunpack.c.l.b16 %v1076
    %v1149 = vunpack.c.l.b16 %v1077
    %v1150 = vpack.c.b16 %v1119, %v1118
    %v1151 = vpack.c.b16 %v1121, %v1120
    %v1152 = vpack.c.b16 %v1123, %v1122
    %v1153 = vpack.c.b16 %v1125, %v1124
    %v1154 = vpack.c.b16 %v1127, %v1126
    %v1155 = vpack.c.b16 %v1129, %v1128
    %v1156 = vpack.c.b16 %v1131, %v1130
    %v1157 = vpack.c.b16 %v1133, %v1132
    %v1158 = vpack.c.b16 %v1135, %v1134
    %v1159 = vpack.c.b16 %v1137, %v1136
    %v1160 = vpack.c.b16 %v1139, %v1138
    %v1161 = vpack.c.b16 %v1141, %v1140
    %v1162 = vpack.c.b16 %v1143, %v1142
    %v1163 = vpack.c.b16 %v1145, %v1144
    %v1164 = vpack.c.b16 %v1147, %v1146
    %v1165 = vpack.c.b16 %v1149, %v1148
    %1182 = vmatprep.subr.bf16.mxu0 0
    %1183 = vmatpush1.bf16.msra.mxu0 %v1150
    %1184 = vmatprep.subr.bf16.mxu0 0
    %1185 = vmatpush1.bf16.msra.mxu0 %v1151
    %1186 = vmatprep.subr.bf16.mxu0 0
    %1187 = vmatpush1.bf16.msra.mxu0 %v1152
    %1188 = vmatprep.subr.bf16.mxu0 0
    %1189 = vmatpush1.bf16.msra.mxu0 %v1153
    %1190 = vmatprep.subr.bf16.mxu0 0
    %1191 = vmatpush1.bf16.msra.mxu0 %v1154
    %1192 = vmatprep.subr.bf16.mxu0 0
    %1193 = vmatpush1.bf16.msra.mxu0 %v1155
    %1194 = vmatprep.subr.bf16.mxu0 0
    %1195 = vmatpush1.bf16.msra.mxu0 %v1156
    %1196 = vmatprep.subr.bf16.mxu0 0
    %1197 = vmatpush1.bf16.msra.mxu0 %v1157
    %1198 = vmatprep.subr.bf16.mxu0 0
    %1199 = vmatpush1.bf16.msra.mxu0 %v1158
    %1200 = vmatprep.subr.bf16.mxu0 0
    %1201 = vmatpush1.bf16.msra.mxu0 %v1159
    %1202 = vmatprep.subr.bf16.mxu0 0
    %1203 = vmatpush1.bf16.msra.mxu0 %v1160
    %1204 = vmatprep.subr.bf16.mxu0 0
    %1205 = vmatpush1.bf16.msra.mxu0 %v1161
    %1206 = vmatprep.subr.bf16.mxu0 0
    %1207 = vmatpush1.bf16.msra.mxu0 %v1162
    %1208 = vmatprep.subr.bf16.mxu0 0
    %1209 = vmatpush1.bf16.msra.mxu0 %v1163
    %1210 = vmatprep.subr.bf16.mxu0 0
    %1211 = vmatpush1.bf16.msra.mxu0 %v1164
    %1212 = vmatprep.subr.bf16.mxu0 0
    %1213 = vmatpush1.bf16.msra.mxu0 %v1165
    %1214 = vmatprep.mubr.bf16.mxu0 %v1002
    %1215 = vmatmul.mubr.bf16.gmra.mrb[0].mxu0 %v1044
    %v1216 = vpop.f32.mrb[0].mxu0
    %v1217 = vadd.f32 %v1084, %v1216
    %v1218 = vpop.f32.mrb[0].mxu0
    %v1219 = vpop.f32.mrb[0].mxu0
    %v1220 = vadd.f32 %v1084, %v1219
    %v1221 = vpop.f32.mrb[0].mxu0
    %1222 = vdwg.mxu0
    %v1223 = vmax.f32 %v1217, 0.0
    %v1224 = vmax.f32 %v1220, 0.0
    %v1225 = vpack.c.bf16 %v1224, %v1223
    %1226 = vmatprep.subr.bf16.mxu0 0
    %1227 = vmatpush1.bf16.msra.mxu0 %v1225
    %1228 = vmatprep.subr.bf16.mxu0 0
    %1229 = vmatpush1.bf16.msra.mxu0 0
    %1230 = vmatprep.subr.bf16.mxu0 0
    %1231 = vmatpush1.bf16.msra.mxu0 0
    %1232 = vmatprep.subr.bf16.mxu0 0
    %1233 = vmatpush1.bf16.msra.mxu0 0
    %1234 = vmatprep.subr.bf16.mxu0 0
    %1235 = vmatpush1.bf16.msra.mxu0 0
    %1236 = vmatprep.subr.bf16.mxu0 0
    %1237 = vmatpush1.bf16.msra.mxu0 0
    %1238 = vmatprep.subr.bf16.mxu0 0
    %1239 = vmatpush1.bf16.msra.mxu0 0
    %1240 = vmatprep.subr.bf16.mxu0 0
    %1241 = vmatpush1.bf16.msra.mxu0 0
    %1242 = vmatprep.subr.bf16.mxu0 0
    %1243 = vmatpush1.bf16.msra.mxu0 0
    %1244 = vmatprep.subr.bf16.mxu0 0
    %1245 = vmatpush1.bf16.msra.mxu0 0
    %1246 = vmatprep.subr.bf16.mxu0 0
    %1247 = vmatpush1.bf16.msra.mxu0 0
    %1248 = vmatprep.subr.bf16.mxu0 0
    %1249 = vmatpush1.bf16.msra.mxu0 0
    %1250 = vmatprep.subr.bf16.mxu0 0
    %1251 = vmatpush1.bf16.msra.mxu0 0
    %1252 = vmatprep.subr.bf16.mxu0 0
    %1253 = vmatpush1.bf16.msra.mxu0 0
    %1254 = vmatprep.subr.bf16.mxu0 0
    %1255 = vmatpush1.bf16.msra.mxu0 0
    %1256 = vmatprep.subr.bf16.mxu0 0
    %1257 = vmatpush1.bf16.msra.mxu0 0
    %1258 = vmatprep.mubr.bf16.mxu0 0
    %1259 = vmatmul.mubr.bf16.gmra.mrb[0].mxu0 %v111
    %v1260 = vpop.f32.mrb[0].mxu0
    %v1261 = vadd.f32 0.0, %v1260
    %v1262 = vpop.f32.mrb[0].mxu0
    %v1263 = vpop.f32.mrb[0].mxu0
    %v1264 = vadd.f32 0.0, %v1263
    %v1265 = vpop.f32.mrb[0].mxu0
    %1266 = vdwg.mxu0
    %v1267 = vpack.c.bf16 %v1264, %v1261
    %s1268 = scalar_lea.vmem %s6, 640
    %v1269 = vld [vmem:[%s1268] sm:$0xf]
    %v1270 = vld [vmem:[%s1268 + $0x4] sm:$0xf]
    %v1271 = vld [vmem:[%s1268 + $0x8] sm:$0xf]
    %v1272 = vld [vmem:[%s1268 + $0xc] sm:$0xf]
    %v1273 = vld [vmem:[%s1268 + $0x10] sm:$0xf]
    %v1274 = vld [vmem:[%s1268 + $0x14] sm:$0xf]
    %v1275 = vld [vmem:[%s1268 + $0x18] sm:$0xf]
    %v1276 = vld [vmem:[%s1268 + $0x1c] sm:$0xf]
    %v1277 = vld [vmem:[%s1268 + $0x20] sm:$0xf]
    %v1278 = vld [vmem:[%s1268 + $0x24] sm:$0xf]
    %v1279 = vld [vmem:[%s1268 + $0x28] sm:$0xf]
    %v1280 = vld [vmem:[%s1268 + $0x2c] sm:$0xf]
    %v1281 = vld [vmem:[%s1268 + $0x30] sm:$0xf]
    %v1282 = vld [vmem:[%s1268 + $0x34] sm:$0xf]
    %v1283 = vld [vmem:[%s1268 + $0x38] sm:$0xf]
    %v1284 = vld [vmem:[%s1268 + $0x3c] sm:$0xf]
    %v1285 = vld [vmem:[%s1268 + $0x40] sm:$0xf]
    %v1286 = vld [vmem:[%s1268 + $0x44] sm:$0xf]
    %v1287 = vld [vmem:[%s1268 + $0x48] sm:$0xf]
    %v1288 = vld [vmem:[%s1268 + $0x4c] sm:$0xf]
    %v1289 = vld [vmem:[%s1268 + $0x50] sm:$0xf]
    %v1290 = vld [vmem:[%s1268 + $0x54] sm:$0xf]
    %v1291 = vld [vmem:[%s1268 + $0x58] sm:$0xf]
    %v1292 = vld [vmem:[%s1268 + $0x5c] sm:$0xf]
    %v1293 = vld [vmem:[%s1268 + $0x60] sm:$0xf]
    %v1294 = vld [vmem:[%s1268 + $0x64] sm:$0xf]
    %v1295 = vld [vmem:[%s1268 + $0x68] sm:$0xf]
    %v1296 = vld [vmem:[%s1268 + $0x6c] sm:$0xf]
    %v1297 = vld [vmem:[%s1268 + $0x70] sm:$0xf]
    %v1298 = vld [vmem:[%s1268 + $0x74] sm:$0xf]
    %v1299 = vld [vmem:[%s1268 + $0x78] sm:$0xf]
    %v1300 = vld [vmem:[%s1268 + $0x7c] sm:$0xf]
    %s1301 = scalar_lea.vmem %s7, 5
    %v1302 = vld [vmem:[%s1301] sm:$0x1]
    %v1304 = vlaneseq
    %v1305 = vshrl.u32 %v1304, 7
    %v1306 = vsub.s32 0, %v1305
    %v1307 = vrot.slane %v1302, %v1306
    %v1341 = vunpack.c.l.b16 %v1269
    %v1342 = vunpack.c.l.b16 %v1270
    %v1343 = vunpack.c.l.b16 %v1271
    %v1344 = vunpack.c.l.b16 %v1272
    %v1345 = vunpack.c.l.b16 %v1273
    %v1346 = vunpack.c.l.b16 %v1274
    %v1347 = vunpack.c.l.b16 %v1275
    %v1348 = vunpack.c.l.b16 %v1276
    %v1349 = vunpack.c.l.b16 %v1277
    %v1350 = vunpack.c.l.b16 %v1278
    %v1351 = vunpack.c.l.b16 %v1279
    %v1352 = vunpack.c.l.b16 %v1280
    %v1353 = vunpack.c.l.b16 %v1281
    %v1354 = vunpack.c.l.b16 %v1282
    %v1355 = vunpack.c.l.b16 %v1283
    %v1356 = vunpack.c.l.b16 %v1284
    %v1357 = vunpack.c.l.b16 %v1285
    %v1358 = vunpack.c.l.b16 %v1286
    %v1359 = vunpack.c.l.b16 %v1287
    %v1360 = vunpack.c.l.b16 %v1288
    %v1361 = vunpack.c.l.b16 %v1289
    %v1362 = vunpack.c.l.b16 %v1290
    %v1363 = vunpack.c.l.b16 %v1291
    %v1364 = vunpack.c.l.b16 %v1292
    %v1365 = vunpack.c.l.b16 %v1293
    %v1366 = vunpack.c.l.b16 %v1294
    %v1367 = vunpack.c.l.b16 %v1295
    %v1368 = vunpack.c.l.b16 %v1296
    %v1369 = vunpack.c.l.b16 %v1297
    %v1370 = vunpack.c.l.b16 %v1298
    %v1371 = vunpack.c.l.b16 %v1299
    %v1372 = vunpack.c.l.b16 %v1300
    %v1373 = vpack.c.b16 %v1342, %v1341
    %v1374 = vpack.c.b16 %v1344, %v1343
    %v1375 = vpack.c.b16 %v1346, %v1345
    %v1376 = vpack.c.b16 %v1348, %v1347
    %v1377 = vpack.c.b16 %v1350, %v1349
    %v1378 = vpack.c.b16 %v1352, %v1351
    %v1379 = vpack.c.b16 %v1354, %v1353
    %v1380 = vpack.c.b16 %v1356, %v1355
    %v1381 = vpack.c.b16 %v1358, %v1357
    %v1382 = vpack.c.b16 %v1360, %v1359
    %v1383 = vpack.c.b16 %v1362, %v1361
    %v1384 = vpack.c.b16 %v1364, %v1363
    %v1385 = vpack.c.b16 %v1366, %v1365
    %v1386 = vpack.c.b16 %v1368, %v1367
    %v1387 = vpack.c.b16 %v1370, %v1369
    %v1388 = vpack.c.b16 %v1372, %v1371
    %1405 = vmatprep.subr.bf16.mxu0 0
    %1406 = vmatpush1.bf16.msra.mxu0 %v1373
    %1407 = vmatprep.subr.bf16.mxu0 0
    %1408 = vmatpush1.bf16.msra.mxu0 %v1374
    %1409 = vmatprep.subr.bf16.mxu0 0
    %1410 = vmatpush1.bf16.msra.mxu0 %v1375
    %1411 = vmatprep.subr.bf16.mxu0 0
    %1412 = vmatpush1.bf16.msra.mxu0 %v1376
    %1413 = vmatprep.subr.bf16.mxu0 0
    %1414 = vmatpush1.bf16.msra.mxu0 %v1377
    %1415 = vmatprep.subr.bf16.mxu0 0
    %1416 = vmatpush1.bf16.msra.mxu0 %v1378
    %1417 = vmatprep.subr.bf16.mxu0 0
    %1418 = vmatpush1.bf16.msra.mxu0 %v1379
    %1419 = vmatprep.subr.bf16.mxu0 0
    %1420 = vmatpush1.bf16.msra.mxu0 %v1380
    %1421 = vmatprep.subr.bf16.mxu0 0
    %1422 = vmatpush1.bf16.msra.mxu0 %v1381
    %1423 = vmatprep.subr.bf16.mxu0 0
    %1424 = vmatpush1.bf16.msra.mxu0 %v1382
    %1425 = vmatprep.subr.bf16.mxu0 0
    %1426 = vmatpush1.bf16.msra.mxu0 %v1383
    %1427 = vmatprep.subr.bf16.mxu0 0
    %1428 = vmatpush1.bf16.msra.mxu0 %v1384
    %1429 = vmatprep.subr.bf16.mxu0 0
    %1430 = vmatpush1.bf16.msra.mxu0 %v1385
    %1431 = vmatprep.subr.bf16.mxu0 0
    %1432 = vmatpush1.bf16.msra.mxu0 %v1386
    %1433 = vmatprep.subr.bf16.mxu0 0
    %1434 = vmatpush1.bf16.msra.mxu0 %v1387
    %1435 = vmatprep.subr.bf16.mxu0 0
    %1436 = vmatpush1.bf16.msra.mxu0 %v1388
    %1437 = vmatprep.mubr.bf16.mxu0 %v1225
    %1438 = vmatmul.mubr.bf16.gmra.mrb[0].mxu0 %v1267
    %v1439 = vpop.f32.mrb[0].mxu0
    %v1440 = vadd.f32 %v1307, %v1439
    %v1441 = vpop.f32.mrb[0].mxu0
    %v1442 = vpop.f32.mrb[0].mxu0
    %v1443 = vadd.f32 %v1307, %v1442
    %v1444 = vpop.f32.mrb[0].mxu0
    %1445 = vdwg.mxu0
    %v1446 = vmax.f32 %v1440, 0.0
    %v1447 = vmax.f32 %v1443, 0.0
    %v1448 = vpack.c.bf16 %v1447, %v1446
    %1449 = vmatprep.subr.bf16.mxu0 0
    %1450 = vmatpush1.bf16.msra.mxu0 %v1448
    %1451 = vmatprep.subr.bf16.mxu0 0
    %1452 = vmatpush1.bf16.msra.mxu0 0
    %1453 = vmatprep.subr.bf16.mxu0 0
    %1454 = vmatpush1.bf16.msra.mxu0 0
    %1455 = vmatprep.subr.bf16.mxu0 0
    %1456 = vmatpush1.bf16.msra.mxu0 0
    %1457 = vmatprep.subr.bf16.mxu0 0
    %1458 = vmatpush1.bf16.msra.mxu0 0
    %1459 = vmatprep.subr.bf16.mxu0 0
    %1460 = vmatpush1.bf16.msra.mxu0 0
    %1461 = vmatprep.subr.bf16.mxu0 0
    %1462 = vmatpush1.bf16.msra.mxu0 0
    %1463 = vmatprep.subr.bf16.mxu0 0
    %1464 = vmatpush1.bf16.msra.mxu0 0
    %1465 = vmatprep.subr.bf16.mxu0 0
    %1466 = vmatpush1.bf16.msra.mxu0 0
    %1467 = vmatprep.subr.bf16.mxu0 0
    %1468 = vmatpush1.bf16.msra.mxu0 0
    %1469 = vmatprep.subr.bf16.mxu0 0
    %1470 = vmatpush1.bf16.msra.mxu0 0
    %1471 = vmatprep.subr.bf16.mxu0 0
    %1472 = vmatpush1.bf16.msra.mxu0 0
    %1473 = vmatprep.subr.bf16.mxu0 0
    %1474 = vmatpush1.bf16.msra.mxu0 0
    %1475 = vmatprep.subr.bf16.mxu0 0
    %1476 = vmatpush1.bf16.msra.mxu0 0
    %1477 = vmatprep.subr.bf16.mxu0 0
    %1478 = vmatpush1.bf16.msra.mxu0 0
    %1479 = vmatprep.subr.bf16.mxu0 0
    %1480 = vmatpush1.bf16.msra.mxu0 0
    %1481 = vmatprep.mubr.bf16.mxu0 0
    %1482 = vmatmul.mubr.bf16.gmra.mrb[0].mxu0 %v111
    %v1483 = vpop.f32.mrb[0].mxu0
    %v1484 = vadd.f32 0.0, %v1483
    %v1485 = vpop.f32.mrb[0].mxu0
    %v1486 = vpop.f32.mrb[0].mxu0
    %v1487 = vadd.f32 0.0, %v1486
    %v1488 = vpop.f32.mrb[0].mxu0
    %1489 = vdwg.mxu0
    %v1490 = vpack.c.bf16 %v1487, %v1484
    %s1491 = scalar_lea.vmem %s6, 768
    %v1492 = vld [vmem:[%s1491] sm:$0xf]
    %v1493 = vld [vmem:[%s1491 + $0x4] sm:$0xf]
    %v1494 = vld [vmem:[%s1491 + $0x8] sm:$0xf]
    %v1495 = vld [vmem:[%s1491 + $0xc] sm:$0xf]
    %v1496 = vld [vmem:[%s1491 + $0x10] sm:$0xf]
    %v1497 = vld [vmem:[%s1491 + $0x14] sm:$0xf]
    %v1498 = vld [vmem:[%s1491 + $0x18] sm:$0xf]
    %v1499 = vld [vmem:[%s1491 + $0x1c] sm:$0xf]
    %v1500 = vld [vmem:[%s1491 + $0x20] sm:$0xf]
    %v1501 = vld [vmem:[%s1491 + $0x24] sm:$0xf]
    %v1502 = vld [vmem:[%s1491 + $0x28] sm:$0xf]
    %v1503 = vld [vmem:[%s1491 + $0x2c] sm:$0xf]
    %v1504 = vld [vmem:[%s1491 + $0x30] sm:$0xf]
    %v1505 = vld [vmem:[%s1491 + $0x34] sm:$0xf]
    %v1506 = vld [vmem:[%s1491 + $0x38] sm:$0xf]
    %v1507 = vld [vmem:[%s1491 + $0x3c] sm:$0xf]
    %v1508 = vld [vmem:[%s1491 + $0x40] sm:$0xf]
    %v1509 = vld [vmem:[%s1491 + $0x44] sm:$0xf]
    %v1510 = vld [vmem:[%s1491 + $0x48] sm:$0xf]
    %v1511 = vld [vmem:[%s1491 + $0x4c] sm:$0xf]
    %v1512 = vld [vmem:[%s1491 + $0x50] sm:$0xf]
    %v1513 = vld [vmem:[%s1491 + $0x54] sm:$0xf]
    %v1514 = vld [vmem:[%s1491 + $0x58] sm:$0xf]
    %v1515 = vld [vmem:[%s1491 + $0x5c] sm:$0xf]
    %v1516 = vld [vmem:[%s1491 + $0x60] sm:$0xf]
    %v1517 = vld [vmem:[%s1491 + $0x64] sm:$0xf]
    %v1518 = vld [vmem:[%s1491 + $0x68] sm:$0xf]
    %v1519 = vld [vmem:[%s1491 + $0x6c] sm:$0xf]
    %v1520 = vld [vmem:[%s1491 + $0x70] sm:$0xf]
    %v1521 = vld [vmem:[%s1491 + $0x74] sm:$0xf]
    %v1522 = vld [vmem:[%s1491 + $0x78] sm:$0xf]
    %v1523 = vld [vmem:[%s1491 + $0x7c] sm:$0xf]
    %s1524 = scalar_lea.vmem %s7, 6
    %v1525 = vld [vmem:[%s1524] sm:$0x1]
    %v1527 = vlaneseq
    %v1528 = vshrl.u32 %v1527, 7
    %v1529 = vsub.s32 0, %v1528
    %v1530 = vrot.slane %v1525, %v1529
    %v1564 = vunpack.c.l.b16 %v1492
    %v1565 = vunpack.c.l.b16 %v1493
    %v1566 = vunpack.c.l.b16 %v1494
    %v1567 = vunpack.c.l.b16 %v1495
    %v1568 = vunpack.c.l.b16 %v1496
    %v1569 = vunpack.c.l.b16 %v1497
    %v1570 = vunpack.c.l.b16 %v1498
    %v1571 = vunpack.c.l.b16 %v1499
    %v1572 = vunpack.c.l.b16 %v1500
    %v1573 = vunpack.c.l.b16 %v1501
    %v1574 = vunpack.c.l.b16 %v1502
    %v1575 = vunpack.c.l.b16 %v1503
    %v1576 = vunpack.c.l.b16 %v1504
    %v1577 = vunpack.c.l.b16 %v1505
    %v1578 = vunpack.c.l.b16 %v1506
    %v1579 = vunpack.c.l.b16 %v1507
    %v1580 = vunpack.c.l.b16 %v1508
    %v1581 = vunpack.c.l.b16 %v1509
    %v1582 = vunpack.c.l.b16 %v1510
    %v1583 = vunpack.c.l.b16 %v1511
    %v1584 = vunpack.c.l.b16 %v1512
    %v1585 = vunpack.c.l.b16 %v1513
    %v1586 = vunpack.c.l.b16 %v1514
    %v1587 = vunpack.c.l.b16 %v1515
    %v1588 = vunpack.c.l.b16 %v1516
    %v1589 = vunpack.c.l.b16 %v1517
    %v1590 = vunpack.c.l.b16 %v1518
    %v1591 = vunpack.c.l.b16 %v1519
    %v1592 = vunpack.c.l.b16 %v1520
    %v1593 = vunpack.c.l.b16 %v1521
    %v1594 = vunpack.c.l.b16 %v1522
    %v1595 = vunpack.c.l.b16 %v1523
    %v1596 = vpack.c.b16 %v1565, %v1564
    %v1597 = vpack.c.b16 %v1567, %v1566
    %v1598 = vpack.c.b16 %v1569, %v1568
    %v1599 = vpack.c.b16 %v1571, %v1570
    %v1600 = vpack.c.b16 %v1573, %v1572
    %v1601 = vpack.c.b16 %v1575, %v1574
    %v1602 = vpack.c.b16 %v1577, %v1576
    %v1603 = vpack.c.b16 %v1579, %v1578
    %v1604 = vpack.c.b16 %v1581, %v1580
    %v1605 = vpack.c.b16 %v1583, %v1582
    %v1606 = vpack.c.b16 %v1585, %v1584
    %v1607 = vpack.c.b16 %v1587, %v1586
    %v1608 = vpack.c.b16 %v1589, %v1588
    %v1609 = vpack.c.b16 %v1591, %v1590
    %v1610 = vpack.c.b16 %v1593, %v1592
    %v1611 = vpack.c.b16 %v1595, %v1594
    %1628 = vmatprep.subr.bf16.mxu0 0
    %1629 = vmatpush1.bf16.msra.mxu0 %v1596
    %1630 = vmatprep.subr.bf16.mxu0 0
    %1631 = vmatpush1.bf16.msra.mxu0 %v1597
    %1632 = vmatprep.subr.bf16.mxu0 0
    %1633 = vmatpush1.bf16.msra.mxu0 %v1598
    %1634 = vmatprep.subr.bf16.mxu0 0
    %1635 = vmatpush1.bf16.msra.mxu0 %v1599
    %1636 = vmatprep.subr.bf16.mxu0 0
    %1637 = vmatpush1.bf16.msra.mxu0 %v1600
    %1638 = vmatprep.subr.bf16.mxu0 0
    %1639 = vmatpush1.bf16.msra.mxu0 %v1601
    %1640 = vmatprep.subr.bf16.mxu0 0
    %1641 = vmatpush1.bf16.msra.mxu0 %v1602
    %1642 = vmatprep.subr.bf16.mxu0 0
    %1643 = vmatpush1.bf16.msra.mxu0 %v1603
    %1644 = vmatprep.subr.bf16.mxu0 0
    %1645 = vmatpush1.bf16.msra.mxu0 %v1604
    %1646 = vmatprep.subr.bf16.mxu0 0
    %1647 = vmatpush1.bf16.msra.mxu0 %v1605
    %1648 = vmatprep.subr.bf16.mxu0 0
    %1649 = vmatpush1.bf16.msra.mxu0 %v1606
    %1650 = vmatprep.subr.bf16.mxu0 0
    %1651 = vmatpush1.bf16.msra.mxu0 %v1607
    %1652 = vmatprep.subr.bf16.mxu0 0
    %1653 = vmatpush1.bf16.msra.mxu0 %v1608
    %1654 = vmatprep.subr.bf16.mxu0 0
    %1655 = vmatpush1.bf16.msra.mxu0 %v1609
    %1656 = vmatprep.subr.bf16.mxu0 0
    %1657 = vmatpush1.bf16.msra.mxu0 %v1610
    %1658 = vmatprep.subr.bf16.mxu0 0
    %1659 = vmatpush1.bf16.msra.mxu0 %v1611
    %1660 = vmatprep.mubr.bf16.mxu0 %v1448
    %1661 = vmatmul.mubr.bf16.gmra.mrb[0].mxu0 %v1490
    %v1662 = vpop.f32.mrb[0].mxu0
    %v1663 = vadd.f32 %v1530, %v1662
    %v1664 = vpop.f32.mrb[0].mxu0
    %v1665 = vpop.f32.mrb[0].mxu0
    %v1666 = vadd.f32 %v1530, %v1665
    %v1667 = vpop.f32.mrb[0].mxu0
    %1668 = vdwg.mxu0
    %v1669 = vmax.f32 %v1663, 0.0
    %v1670 = vmax.f32 %v1666, 0.0
    %v1671 = vpack.c.bf16 %v1670, %v1669
    %v1672 = vld [vmem:[%s8] sm:$0x1]
    %v1674 = vsel %vm109, %v1672, 0
    %1676 = vmatprep.subr.bf16.mxu0 0
    %1677 = vmatpush1.bf16.msra.mxu0 %v1671
    %1678 = vmatprep.subr.bf16.mxu0 0
    %1679 = vmatpush1.bf16.msra.mxu0 0
    %1680 = vmatprep.subr.bf16.mxu0 0
    %1681 = vmatpush1.bf16.msra.mxu0 0
    %1682 = vmatprep.subr.bf16.mxu0 0
    %1683 = vmatpush1.bf16.msra.mxu0 0
    %1684 = vmatprep.subr.bf16.mxu0 0
    %1685 = vmatpush1.bf16.msra.mxu0 0
    %1686 = vmatprep.subr.bf16.mxu0 0
    %1687 = vmatpush1.bf16.msra.mxu0 0
    %1688 = vmatprep.subr.bf16.mxu0 0
    %1689 = vmatpush1.bf16.msra.mxu0 0
    %1690 = vmatprep.subr.bf16.mxu0 0
    %1691 = vmatpush1.bf16.msra.mxu0 0
    %1692 = vmatprep.subr.bf16.mxu0 0
    %1693 = vmatpush1.bf16.msra.mxu0 0
    %1694 = vmatprep.subr.bf16.mxu0 0
    %1695 = vmatpush1.bf16.msra.mxu0 0
    %1696 = vmatprep.subr.bf16.mxu0 0
    %1697 = vmatpush1.bf16.msra.mxu0 0
    %1698 = vmatprep.subr.bf16.mxu0 0
    %1699 = vmatpush1.bf16.msra.mxu0 0
    %1700 = vmatprep.subr.bf16.mxu0 0
    %1701 = vmatpush1.bf16.msra.mxu0 0
    %1702 = vmatprep.subr.bf16.mxu0 0
    %1703 = vmatpush1.bf16.msra.mxu0 0
    %1704 = vmatprep.subr.bf16.mxu0 0
    %1705 = vmatpush1.bf16.msra.mxu0 0
    %1706 = vmatprep.subr.bf16.mxu0 0
    %1707 = vmatpush1.bf16.msra.mxu0 0
    %1708 = vmatprep.mubr.bf16.mxu0 0
    %1709 = vmatmul.mubr.bf16.gmra.mrb[0].mxu0 %v1674
    %v1710 = vpop.f32.mrb[0].mxu0
    %v1711 = vadd.f32 0.0, %v1710
    %v1712 = vpop.f32.mrb[0].mxu0
    %v1713 = vpop.f32.mrb[0].mxu0
    %v1714 = vpop.f32.mrb[0].mxu0
    %1715 = vdwg.mxu0
    %v1716 = vpack.c.bf16 %v1711, %v1711
    %v1717 = vld [vmem:[%s9] sm:$0xf]
    %v1718 = vld [vmem:[%s9 + $0x4] sm:$0xf]
    %v1719 = vld [vmem:[%s9 + $0x8] sm:$0xf]
    %v1720 = vld [vmem:[%s9 + $0xc] sm:$0xf]
    %v1721 = vld [vmem:[%s9 + $0x10] sm:$0xf]
    %v1722 = vld [vmem:[%s9 + $0x14] sm:$0xf]
    %v1723 = vld [vmem:[%s9 + $0x18] sm:$0xf]
    %v1724 = vld [vmem:[%s9 + $0x1c] sm:$0xf]
    %v1725 = vld [vmem:[%s9 + $0x20] sm:$0xf]
    %v1726 = vld [vmem:[%s9 + $0x24] sm:$0xf]
    %v1727 = vld [vmem:[%s9 + $0x28] sm:$0xf]
    %v1728 = vld [vmem:[%s9 + $0x2c] sm:$0xf]
    %v1729 = vld [vmem:[%s9 + $0x30] sm:$0xf]
    %v1730 = vld [vmem:[%s9 + $0x34] sm:$0xf]
    %v1731 = vld [vmem:[%s9 + $0x38] sm:$0xf]
    %v1732 = vld [vmem:[%s9 + $0x3c] sm:$0xf]
    %v1733 = vld [vmem:[%s10] sm:$0x1]
    %v1735 = vlaneseq
    %v1736 = vshrl.u32 %v1735, 7
    %v1737 = vsub.s32 0, %v1736
    %v1738 = vrot.slane %v1733, %v1737
    %v1756 = vunpack.c.l.b16 %v1717
    %v1757 = vunpack.c.l.b16 %v1718
    %v1758 = vunpack.c.l.b16 %v1719
    %v1759 = vunpack.c.l.b16 %v1720
    %v1760 = vunpack.c.l.b16 %v1721
    %v1761 = vunpack.c.l.b16 %v1722
    %v1762 = vunpack.c.l.b16 %v1723
    %v1763 = vunpack.c.l.b16 %v1724
    %v1764 = vunpack.c.l.b16 %v1725
    %v1765 = vunpack.c.l.b16 %v1726
    %v1766 = vunpack.c.l.b16 %v1727
    %v1767 = vunpack.c.l.b16 %v1728
    %v1768 = vunpack.c.l.b16 %v1729
    %v1769 = vunpack.c.l.b16 %v1730
    %v1770 = vunpack.c.l.b16 %v1731
    %v1771 = vunpack.c.l.b16 %v1732
    %v1772 = vpack.c.b16 %v1757, %v1756
    %v1773 = vpack.c.b16 %v1759, %v1758
    %v1774 = vpack.c.b16 %v1761, %v1760
    %v1775 = vpack.c.b16 %v1763, %v1762
    %v1776 = vpack.c.b16 %v1765, %v1764
    %v1777 = vpack.c.b16 %v1767, %v1766
    %v1778 = vpack.c.b16 %v1769, %v1768
    %v1779 = vpack.c.b16 %v1771, %v1770
    %1788 = vmatprep.subr.bf16.mxu0 0
    %1789 = vmatpush1.bf16.msra.mxu0 %v1772
    %1790 = vmatprep.subr.bf16.mxu0 0
    %1791 = vmatpush1.bf16.msra.mxu0 %v1773
    %1792 = vmatprep.subr.bf16.mxu0 0
    %1793 = vmatpush1.bf16.msra.mxu0 %v1774
    %1794 = vmatprep.subr.bf16.mxu0 0
    %1795 = vmatpush1.bf16.msra.mxu0 %v1775
    %1796 = vmatprep.subr.bf16.mxu0 0
    %1797 = vmatpush1.bf16.msra.mxu0 %v1776
    %1798 = vmatprep.subr.bf16.mxu0 0
    %1799 = vmatpush1.bf16.msra.mxu0 %v1777
    %1800 = vmatprep.subr.bf16.mxu0 0
    %1801 = vmatpush1.bf16.msra.mxu0 %v1778
    %1802 = vmatprep.subr.bf16.mxu0 0
    %1803 = vmatpush1.bf16.msra.mxu0 %v1779
    %1804 = vmatprep.subr.bf16.mxu0 0
    %1805 = vmatpush1.bf16.msra.mxu0 0
    %1806 = vmatprep.subr.bf16.mxu0 0
    %1807 = vmatpush1.bf16.msra.mxu0 0
    %1808 = vmatprep.subr.bf16.mxu0 0
    %1809 = vmatpush1.bf16.msra.mxu0 0
    %1810 = vmatprep.subr.bf16.mxu0 0
    %1811 = vmatpush1.bf16.msra.mxu0 0
    %1812 = vmatprep.subr.bf16.mxu0 0
    %1813 = vmatpush1.bf16.msra.mxu0 0
    %1814 = vmatprep.subr.bf16.mxu0 0
    %1815 = vmatpush1.bf16.msra.mxu0 0
    %1816 = vmatprep.subr.bf16.mxu0 0
    %1817 = vmatpush1.bf16.msra.mxu0 0
    %1818 = vmatprep.subr.bf16.mxu0 0
    %1819 = vmatpush1.bf16.msra.mxu0 0
    %1820 = vmatprep.mubr.bf16.mxu0 0
    %1821 = vmatmul.mubr.bf16.gmra.mrb[0].mxu0 %v1716
    %v1822 = vpop.f32.mrb[0].mxu0
    %v1823 = vadd.f32 %v1738, %v1822
    %v1824 = vpop.f32.mrb[0].mxu0
    %v1825 = vpop.f32.mrb[0].mxu0
    %v1826 = vpop.f32.mrb[0].mxu0
    %1827 = vdwg.mxu0
    %v1828 = vmax.f32 %v1823, 0.0
    %v1829 = vpack.c.bf16 %v1828, %v1828
    %v1830 = vld [vmem:[%s11] sm:$0xf]
    %v1831 = vld [vmem:[%s11 + $0x4] sm:$0xf]
    %v1832 = vld [vmem:[%s11 + $0x8] sm:$0xf]
    %v1833 = vld [vmem:[%s11 + $0xc] sm:$0xf]
    %v1834 = vld [vmem:[%s11 + $0x10] sm:$0xf]
    %v1835 = vld [vmem:[%s11 + $0x14] sm:$0xf]
    %v1836 = vld [vmem:[%s11 + $0x18] sm:$0xf]
    %v1837 = vld [vmem:[%s11 + $0x1c] sm:$0xf]
    %v1838 = vld [vmem:[%s11 + $0x20] sm:$0xf]
    %v1839 = vld [vmem:[%s11 + $0x24] sm:$0xf]
    %v1840 = vld [vmem:[%s11 + $0x28] sm:$0xf]
    %v1841 = vld [vmem:[%s11 + $0x2c] sm:$0xf]
    %v1842 = vld [vmem:[%s11 + $0x30] sm:$0xf]
    %v1843 = vld [vmem:[%s11 + $0x34] sm:$0xf]
    %v1844 = vld [vmem:[%s11 + $0x38] sm:$0xf]
    %v1845 = vld [vmem:[%s11 + $0x3c] sm:$0xf]
    %v1846 = vld [vmem:[%s12] sm:$0x1]
    %v1848 = vlaneseq
    %v1849 = vshrl.u32 %v1848, 7
    %v1850 = vsub.s32 0, %v1849
    %v1851 = vrot.slane %v1846, %v1850
    %v1869 = vunpack.c.l.b16 %v1830
    %v1870 = vunpack.c.l.b16 %v1831
    %v1871 = vunpack.c.l.b16 %v1832
    %v1872 = vunpack.c.l.b16 %v1833
    %v1873 = vunpack.c.l.b16 %v1834
    %v1874 = vunpack.c.l.b16 %v1835
    %v1875 = vunpack.c.l.b16 %v1836
    %v1876 = vunpack.c.l.b16 %v1837
    %v1877 = vunpack.c.l.b16 %v1838
    %v1878 = vunpack.c.l.b16 %v1839
    %v1879 = vunpack.c.l.b16 %v1840
    %v1880 = vunpack.c.l.b16 %v1841
    %v1881 = vunpack.c.l.b16 %v1842
    %v1882 = vunpack.c.l.b16 %v1843
    %v1883 = vunpack.c.l.b16 %v1844
    %v1884 = vunpack.c.l.b16 %v1845
    %v1885 = vpack.c.b16 %v1870, %v1869
    %v1886 = vpack.c.b16 %v1872, %v1871
    %v1887 = vpack.c.b16 %v1874, %v1873
    %v1888 = vpack.c.b16 %v1876, %v1875
    %v1889 = vpack.c.b16 %v1878, %v1877
    %v1890 = vpack.c.b16 %v1880, %v1879
    %v1891 = vpack.c.b16 %v1882, %v1881
    %v1892 = vpack.c.b16 %v1884, %v1883
    %1901 = vmatprep.subr.bf16.mxu0 0
    %1902 = vmatpush1.bf16.msra.mxu0 %v1885
    %1903 = vmatprep.subr.bf16.mxu0 0
    %1904 = vmatpush1.bf16.msra.mxu0 %v1886
    %1905 = vmatprep.subr.bf16.mxu0 0
    %1906 = vmatpush1.bf16.msra.mxu0 %v1887
    %1907 = vmatprep.subr.bf16.mxu0 0
    %1908 = vmatpush1.bf16.msra.mxu0 %v1888
    %1909 = vmatprep.subr.bf16.mxu0 0
    %1910 = vmatpush1.bf16.msra.mxu0 %v1889
    %1911 = vmatprep.subr.bf16.mxu0 0
    %1912 = vmatpush1.bf16.msra.mxu0 %v1890
    %1913 = vmatprep.subr.bf16.mxu0 0
    %1914 = vmatpush1.bf16.msra.mxu0 %v1891
    %1915 = vmatprep.subr.bf16.mxu0 0
    %1916 = vmatpush1.bf16.msra.mxu0 %v1892
    %1917 = vmatprep.subr.bf16.mxu0 0
    %1918 = vmatpush1.bf16.msra.mxu0 0
    %1919 = vmatprep.subr.bf16.mxu0 0
    %1920 = vmatpush1.bf16.msra.mxu0 0
    %1921 = vmatprep.subr.bf16.mxu0 0
    %1922 = vmatpush1.bf16.msra.mxu0 0
    %1923 = vmatprep.subr.bf16.mxu0 0
    %1924 = vmatpush1.bf16.msra.mxu0 0
    %1925 = vmatprep.subr.bf16.mxu0 0
    %1926 = vmatpush1.bf16.msra.mxu0 0
    %1927 = vmatprep.subr.bf16.mxu0 0
    %1928 = vmatpush1.bf16.msra.mxu0 0
    %1929 = vmatprep.subr.bf16.mxu0 0
    %1930 = vmatpush1.bf16.msra.mxu0 0
    %1931 = vmatprep.subr.bf16.mxu0 0
    %1932 = vmatpush1.bf16.msra.mxu0 0
    %1933 = vmatprep.mubr.bf16.mxu0 0
    %1934 = vmatmul.mubr.bf16.gmra.mrb[0].mxu0 %v1829
    %v1935 = vpop.f32.mrb[0].mxu0
    %v1936 = vadd.f32 %v1851, %v1935
    %v1937 = vpop.f32.mrb[0].mxu0
    %v1938 = vpop.f32.mrb[0].mxu0
    %v1939 = vpop.f32.mrb[0].mxu0
    %1940 = vdwg.mxu0
    %v1941 = vlaneseq
    %v1942 = vand.u32 %v1941, 127
    %vm1943 = vcmp.lt.s32.totalorder %v1942, 3
    %v1944 = vsel %vm1943, %v1936, -1e+30
    %vm1945 = vcmask 1041408
    %v1946 = vsel %vm1945, %v1944, -inf
    %1947 = vmax.xlane.f32.xlu0 %v1946
    %v1948 = vpop.xlane.xlu0 %1947
    %v1949 = vsub.f32 %v1944, %v1948
    %v1950 = vmul.f32 %v1949, 1.442695
    %v1951 = vpow.pop %v1950
    %v1952 = vsel %vm1943, %v1951, 0.0
    %v1953 = vsel %vm1945, %v1952, 0.0
    %1954 = vadd.xlane.f32.xlu0 %v1953
    %v1955 = vpop.xlane.xlu0 %1954
    %v1956 = vlog2.pop %v1955
    %v1957 = vmul.f32 %v1956, 0.6931472
    %v1958 = vsub.f32 %v1949, %v1957
    %1959 = vst [vmem:[#allocation2] sm:$0x3] %v1958
    // Predicated region
    $region54: #{graphsage_forward.1} parent=1 // pred_check
      _
    $region55: #{graphsage_forward.1} parent=1 // pred_check_branch
      %1961 = sbr.rel (0) target = $region57
    $region56: #{graphsage_forward.1} parent=1 // pred_region
      %s1963 = ssub.s32 32, 32
      %1964 = vsyncadd [#allocation3], %s1963
      %s1966 = sshll.u32 [#allocation2], 4
      %s1967 = int_to_ptr.vmem [resolvable:$true] %s1966
      %1969 = dma.vmem_to_hbm [thread:$0]  %s1967, 32, %s13, [#allocation3]
    $region57: #{graphsage_forward.1} parent=1 // pred_fallthru
      _
    // Predicated region
    $region58: #{graphsage_forward.1} parent=1 // pred_check
      _
    $region59: #{graphsage_forward.1} parent=1 // pred_check_branch
      %1971 = sbr.rel (0) target = $region61
    $region60: #{graphsage_forward.1} parent=1 // pred_region
      %1972 = dma.done [#allocation3], 32
    $region61: #{graphsage_forward.1} parent=1 // pred_fallthru
      _
    %1973 = vsyncpa [#allocation3], 1

</llo_original>
